<compile_context>
chip_gen: v7x
topology: tpu7x:2x2x1
jax: 0.10.0
libtpu: 0.0.40
codegen_flags: <defaults>
</compile_context>

<pallas_src>
import jax
import jax.numpy as jnp
from jax.experimental import pallas as pl
from jax.experimental.pallas import tpu as pltpu


_CONTRACT_LAST = (((1,), (1,)), ((), ()))  # contract last dim of both operands


def _cross_attention_kernel(gamma_ref, xt_ref, wq_ref, wk_ref, wv_ref,
                            bq_ref, bk_ref, bv_ref, out_ref,
                            kt_ref, vt_ref):
    # xt_ref : (HW, C)  bf16   x^T for the current batch element (resident)
    # wq/wk  : (Cq, C)  bf16   1x1-conv weights; wv: (C, C) bf16
    # bq/bk  : (1, Cq)  f32    biases; bv: (1, C) f32
    # gamma  : (1, 1)   f32    in SMEM
    # out_ref: (TQ, C)         output tile (transposed layout)
    # kt_ref : (HW, Cq) bf16   K^T cache;  vt_ref: (HW, C) bf16  V^T cache
    q_idx = pl.program_id(1)
    tq = out_ref.shape[0]

    # ---- projections for keys / values: computed once per batch element ----
    @pl.when(q_idx == 0)
    def _():
        xt = xt_ref[...]
        kt = jax.lax.dot_general(xt, wk_ref[...], _CONTRACT_LAST,
                                 preferred_element_type=jnp.float32)
        kt_ref[...] = (kt + bk_ref[...]).astype(kt_ref.dtype)        # (HW, Cq)
        vt = jax.lax.dot_general(xt, wv_ref[...], _CONTRACT_LAST,
                                 preferred_element_type=jnp.float32)
        vt_ref[...] = (vt + bv_ref[...]).astype(vt_ref.dtype)        # (HW, C)

    # ---- query projection for this tile of pixels ----
    row0 = pl.multiple_of(q_idx * tq, tq)
    xq = xt_ref[pl.ds(row0, tq), :]                                   # (TQ, C)
    qt = jax.lax.dot_general(xq, wq_ref[...], _CONTRACT_LAST,
                             preferred_element_type=jnp.float32)
    qt = (qt + bq_ref[...]).astype(jnp.bfloat16)                      # (TQ, Cq)

    # ---- attention scores + row softmax (f32) ----
    scores = jax.lax.dot_general(qt, kt_ref[...], _CONTRACT_LAST,
                                 preferred_element_type=jnp.float32)  # (TQ, HW)
    scores = scores - jnp.max(scores, axis=-1, keepdims=True)
    p = jnp.exp(scores)
    p = p * pl.reciprocal(jnp.sum(p, axis=-1, keepdims=True), approx=True)

    # ---- weighted sum of values:  feat^T = P @ V^T ----
    feat = jnp.dot(p.astype(jnp.bfloat16), vt_ref[...],
                   preferred_element_type=jnp.float32)                # (TQ, C)

    out_ref[...] = ((1.0 + gamma_ref[0, 0]) * feat).astype(out_ref.dtype)


def cross_attention(x, wq, bq, wk, bk, wv, bv, gamma):
    """x: (B, C, H, W) f32; wq/wk: (C//ratio, C); wv: (C, C); gamma: (1,)."""
    B, C, H, W = x.shape
    HW = H * W
    Cq = wq.shape[0]

    # Query tile: a multiple of 128 that divides HW (lane/sublane friendly),
    # otherwise fall back to the full spatial extent.
    tq = HW
    for cand in (512, 256, 128):
        if HW % cand == 0:
            tq = cand
            break
    nq = HW // tq

    # NCHW -> (B, HW, C); bf16 MXU operands (f32 accumulation in-kernel).
    xt = jnp.transpose(x.reshape(B, C, HW), (0, 2, 1)).astype(jnp.bfloat16)
    wq_b = wq.astype(jnp.bfloat16)
    wk_b = wk.astype(jnp.bfloat16)
    wv_b = wv.astype(jnp.bfloat16)
    bq2 = bq.astype(jnp.float32).reshape(1, Cq)
    bk2 = bk.astype(jnp.float32).reshape(1, Cq)
    bv2 = bv.astype(jnp.float32).reshape(1, C)
    gamma_smem = jnp.asarray(gamma, jnp.float32).reshape(1, 1)

    out_t = pl.pallas_call(
        _cross_attention_kernel,
        out_shape=jax.ShapeDtypeStruct((B, HW, C), x.dtype),
        grid_spec=pltpu.PrefetchScalarGridSpec(
            num_scalar_prefetch=0,
            grid=(B, nq),
            in_specs=[
                pl.BlockSpec(memory_space=pltpu.MemorySpace.SMEM),             # gamma
                pl.BlockSpec((pl.Squeezed(), HW, C), lambda b, q: (b, 0, 0)),  # x^T (per batch, resident across q)
                pl.BlockSpec((Cq, C), lambda b, q: (0, 0)),                    # Wq
                pl.BlockSpec((Cq, C), lambda b, q: (0, 0)),                    # Wk
                pl.BlockSpec((C, C), lambda b, q: (0, 0)),                     # Wv
                pl.BlockSpec((1, Cq), lambda b, q: (0, 0)),                    # bq
                pl.BlockSpec((1, Cq), lambda b, q: (0, 0)),                    # bk
                pl.BlockSpec((1, C), lambda b, q: (0, 0)),                     # bv
            ],
            out_specs=pl.BlockSpec((pl.Squeezed(), tq, C), lambda b, q: (b, q, 0)),
            scratch_shapes=[
                pltpu.VMEM((HW, Cq), jnp.bfloat16),   # K^T cache
                pltpu.VMEM((HW, C), jnp.bfloat16),    # V^T cache
            ],
        ),
        compiler_params=pltpu.CompilerParams(
            # Batch axis over TensorCores; the query-tile axis must stay
            # "arbitrary" because K^T/V^T scratch is filled at q == 0 and
            # reused by the later q steps of the same batch element.
            dimension_semantics=("parallel", "arbitrary"),
        ),
    )(gamma_smem, xt, wq_b, wk_b, wv_b, bq2, bk2, bv2)

    # (B, HW, C) -> (B, C, H, W)
    return jnp.transpose(out_t, (0, 2, 1)).reshape(B, C, H, W)


def _reference(x, wq, bq, wk, bk, wv, bv, gamma_val):
    """Pure-JAX f32 reference mirroring the PyTorch forward."""
    B, C, H, W = x.shape
    HW = H * W
    xf = x.reshape(B, C, HW).astype(jnp.float32)
    q = jnp.einsum("oc,bcn->bon", wq, xf) + bq[None, :, None]   # (B, Cq, HW)
    k = jnp.einsum("oc,bcn->bon", wk, xf) + bk[None, :, None]   # (B, Cq, HW)
    v = jnp.einsum("oc,bcn->bon", wv, xf) + bv[None, :, None]   # (B, C,  HW)
    mask = jnp.einsum("bci,bcj->bij", q, k)                     # (B, HW, HW)
    mask = jax.nn.softmax(mask, axis=-1)
    feat = jnp.einsum("bcj,bij->bci", v, mask)                  # (B, C, HW)
    feat = (1.0 + gamma_val) * feat                             # gamma*feat + feat
    return feat.reshape(B, C, H, W)


if __name__ == "__main__":
    key = jax.random.PRNGKey(0)
    B, C, ratio, H, W = 2, 128, 8, 16, 16
    Cq = C // ratio

    k_x, k_wq, k_bq, k_wk, k_bk, k_wv, k_bv = jax.random.split(key, 7)
    x = jax.random.normal(k_x, (B, C, H, W), dtype=jnp.float32)

    # PyTorch Conv2d default init: U(-1/sqrt(fan_in), 1/sqrt(fan_in)), fan_in = C (1x1 kernel).
    bound = 1.0 / (C ** 0.5)
    uinit = lambda k, shape: jax.random.uniform(k, shape, jnp.float32, -bound, bound)
    wq, bq = uinit(k_wq, (Cq, C)), uinit(k_bq, (Cq,))
    wk, bk = uinit(k_wk, (Cq, C)), uinit(k_bk, (Cq,))
    wv, bv = uinit(k_wv, (C, C)), uinit(k_bv, (C,))

    # gamma is nn.Parameter(torch.zeros(1)); also exercise a nonzero value.
    for gamma_val in (0.0, 0.7):
        gamma = jnp.full((1,), gamma_val, dtype=jnp.float32)
        out = cross_attention(x, wq, bq, wk, bk, wv, bv, gamma)
        out = jax.block_until_ready(out)
        ref = _reference(x, wq, bq, wk, bk, wv, bv, gamma_val)
        assert out.shape == (B, C, H, W)
        err = float(jnp.max(jnp.abs(out - ref)))
        # bf16 MXU operands with f32 accumulation -> small deviations vs f32 ref.
        assert jnp.allclose(out, ref, atol=3e-2, rtol=3e-2), (
            f"mismatch at gamma={gamma_val}: max abs err {err}"
        )

    print("KERNEL_OK")
</pallas_src>

<mosaic_0001>
module attributes {stable_mosaic.version = 11 : i64} {
  func.func @_cross_attention_kernel(%arg0: i32, %arg1: i32, %arg2: memref<1x1xf32, #tpu.memory_space<smem>>, %arg3: memref<1x256x128xbf16, #tpu.memory_space<vmem>>, %arg4: memref<16x128xbf16, #tpu.memory_space<vmem>>, %arg5: memref<16x128xbf16, #tpu.memory_space<vmem>>, %arg6: memref<128x128xbf16, #tpu.memory_space<vmem>>, %arg7: memref<1x16xf32, #tpu.memory_space<vmem>>, %arg8: memref<1x16xf32, #tpu.memory_space<vmem>>, %arg9: memref<1x128xf32, #tpu.memory_space<vmem>>, %arg10: memref<1x256x128xf32, #tpu.memory_space<vmem>>, %arg11: memref<256x16xbf16, #tpu.memory_space<vmem>>, %arg12: memref<256x128xbf16, #tpu.memory_space<vmem>>) attributes {dimension_semantics = [#tpu.dimension_semantics<parallel>, #tpu.dimension_semantics<arbitrary>], iteration_bounds = array<i64: 2, 1>, scalar_prefetch = 0 : i64, scratch_operands = 2 : i64, tpu.core_type = #tpu.core_type<tc>, window_params = [{transform_indices = @transform_0, window_bounds = array<i64: 1, 1>}, {transform_indices = @transform_1, window_bounds = array<i64: 1, 256, 128>}, {pipeline_mode = #tpu.pipeline_mode<synchronous>, transform_indices = @transform_2, window_bounds = array<i64: 16, 128>}, {pipeline_mode = #tpu.pipeline_mode<synchronous>, transform_indices = @transform_3, window_bounds = array<i64: 16, 128>}, {pipeline_mode = #tpu.pipeline_mode<synchronous>, transform_indices = @transform_4, window_bounds = array<i64: 128, 128>}, {pipeline_mode = #tpu.pipeline_mode<synchronous>, transform_indices = @transform_5, window_bounds = array<i64: 1, 16>}, {pipeline_mode = #tpu.pipeline_mode<synchronous>, transform_indices = @transform_6, window_bounds = array<i64: 1, 16>}, {pipeline_mode = #tpu.pipeline_mode<synchronous>, transform_indices = @transform_7, window_bounds = array<i64: 1, 128>}, {transform_indices = @transform_8, window_bounds = array<i64: 1, 256, 128>}]} {
    %c0_i32 = arith.constant 0 : i32
    %0 = arith.cmpi eq, %arg1, %c0_i32 : i32
    %1 = arith.extui %0 : i1 to i32
    %c0_i32_0 = arith.constant 0 : i32
    %2 = arith.cmpi ne, %1, %c0_i32_0 : i32
    scf.if %2 {
      %c0_20 = arith.constant 0 : index
      %c0_21 = arith.constant 0 : index
      %c0_22 = arith.constant 0 : index
      %36 = vector.load %arg3[%c0_20, %c0_21, %c0_22] : memref<1x256x128xbf16, #tpu.memory_space<vmem>>, vector<1x256x128xbf16>
      %37 = vector.shape_cast %36 : vector<1x256x128xbf16> to vector<256x128xbf16>
      %c0_23 = arith.constant 0 : index
      %c0_24 = arith.constant 0 : index
      %38 = vector.load %arg5[%c0_23, %c0_24] : memref<16x128xbf16, #tpu.memory_space<vmem>>, vector<16x128xbf16>
      %cst_25 = arith.constant dense<0.000000e+00> : vector<256x16xf32>
      %39 = tpu.matmul %37, %38, %cst_25 {dimension_numbers = #tpu.dot_dimension_numbers<[1], [1], [0], [0], [0, 0, 1, 0], [], []>} : vector<256x128xbf16>, vector<16x128xbf16>, vector<256x16xf32> -> vector<256x16xf32>
      %c0_26 = arith.constant 0 : index
      %c0_27 = arith.constant 0 : index
      %40 = vector.load %arg8[%c0_26, %c0_27] : memref<1x16xf32, #tpu.memory_space<vmem>>, vector<1x16xf32>
      %41 = vector.broadcast %40 : vector<1x16xf32> to vector<256x16xf32>
      %42 = arith.addf %39, %41 : vector<256x16xf32>
      %43 = arith.truncf %42 : vector<256x16xf32> to vector<256x16xbf16>
      %c0_28 = arith.constant 0 : index
      %c0_29 = arith.constant 0 : index
      %44 = vector.load %arg11[%c0_28, %c0_29] : memref<256x16xbf16, #tpu.memory_space<vmem>>, vector<256x16xbf16>
      tpu.vector_store %arg11[%c0_28, %c0_29], %43 {strides = array<i32>} : memref<256x16xbf16, #tpu.memory_space<vmem>>, vector<256x16xbf16>,
      %c0_30 = arith.constant 0 : index
      %c0_31 = arith.constant 0 : index
      %45 = vector.load %arg6[%c0_30, %c0_31] : memref<128x128xbf16, #tpu.memory_space<vmem>>, vector<128x128xbf16>
      %cst_32 = arith.constant dense<0.000000e+00> : vector<256x128xf32>
      %46 = tpu.matmul %37, %45, %cst_32 {dimension_numbers = #tpu.dot_dimension_numbers<[1], [1], [0], [0], [0, 0, 1, 0], [], []>} : vector<256x128xbf16>, vector<128x128xbf16>, vector<256x128xf32> -> vector<256x128xf32>
      %c0_33 = arith.constant 0 : index
      %c0_34 = arith.constant 0 : index
      %47 = vector.load %arg9[%c0_33, %c0_34] : memref<1x128xf32, #tpu.memory_space<vmem>>, vector<1x128xf32>
      %48 = vector.broadcast %47 : vector<1x128xf32> to vector<256x128xf32>
      %49 = arith.addf %46, %48 : vector<256x128xf32>
      %50 = arith.truncf %49 : vector<256x128xf32> to vector<256x128xbf16>
      %c0_35 = arith.constant 0 : index
      %c0_36 = arith.constant 0 : index
      %51 = vector.load %arg12[%c0_35, %c0_36] : memref<256x128xbf16, #tpu.memory_space<vmem>>, vector<256x128xbf16>
      tpu.vector_store %arg12[%c0_35, %c0_36], %50 {strides = array<i32>} : memref<256x128xbf16, #tpu.memory_space<vmem>>, vector<256x128xbf16>,
    } else {
    }
    %c256_i32 = arith.constant 256 : i32
    %3 = arith.muli %arg1, %c256_i32 : i32
    %4 = tpu.assume_multiple %3, 256 : i32
    %c0 = arith.constant 0 : index
    %5 = arith.index_cast %4 : i32 to index
    %c0_1 = arith.constant 0 : index
    %6 = vector.load %arg3[%c0, %5, %c0_1] : memref<1x256x128xbf16, #tpu.memory_space<vmem>>, vector<1x256x128xbf16>
    %7 = vector.shape_cast %6 : vector<1x256x128xbf16> to vector<256x128xbf16>
    %c0_2 = arith.constant 0 : index
    %c0_3 = arith.constant 0 : index
    %8 = vector.load %arg4[%c0_2, %c0_3] : memref<16x128xbf16, #tpu.memory_space<vmem>>, vector<16x128xbf16>
    %cst = arith.constant dense<0.000000e+00> : vector<256x16xf32>
    %9 = tpu.matmul %7, %8, %cst {dimension_numbers = #tpu.dot_dimension_numbers<[1], [1], [0], [0], [0, 0, 1, 0], [], []>} : vector<256x128xbf16>, vector<16x128xbf16>, vector<256x16xf32> -> vector<256x16xf32>
    %c0_4 = arith.constant 0 : index
    %c0_5 = arith.constant 0 : index
    %10 = vector.load %arg7[%c0_4, %c0_5] : memref<1x16xf32, #tpu.memory_space<vmem>>, vector<1x16xf32>
    %11 = vector.broadcast %10 : vector<1x16xf32> to vector<256x16xf32>
    %12 = arith.addf %9, %11 : vector<256x16xf32>
    %13 = arith.truncf %12 : vector<256x16xf32> to vector<256x16xbf16>
    %c0_6 = arith.constant 0 : index
    %c0_7 = arith.constant 0 : index
    %14 = vector.load %arg11[%c0_6, %c0_7] : memref<256x16xbf16, #tpu.memory_space<vmem>>, vector<256x16xbf16>
    %cst_8 = arith.constant dense<0.000000e+00> : vector<256x256xf32>
    %15 = tpu.matmul %13, %14, %cst_8 {dimension_numbers = #tpu.dot_dimension_numbers<[1], [1], [0], [0], [0, 0, 1, 0], [], []>} : vector<256x16xbf16>, vector<256x16xbf16>, vector<256x256xf32> -> vector<256x256xf32>
    %cst_9 = arith.constant dense<0xFF800000> : vector<256xf32>
    %16 = vector.multi_reduction <maximumf>, %15, %cst_9 [1] : vector<256x256xf32> to vector<256xf32>
    %17 = vector.shape_cast %16 : vector<256xf32> to vector<256x1xf32>
    %18 = vector.broadcast %17 : vector<256x1xf32> to vector<256x256xf32>
    %19 = arith.subf %15, %18 : vector<256x256xf32>
    %20 = math.exp %19 : vector<256x256xf32>
    %cst_10 = arith.constant dense<0.000000e+00> : vector<256xf32>
    %21 = vector.multi_reduction <add>, %20, %cst_10 [1] : vector<256x256xf32> to vector<256xf32>
    %22 = vector.shape_cast %21 : vector<256xf32> to vector<256x1xf32>
    %23 = tpu.reciprocal %22 {approx = true} : vector<256x1xf32> -> vector<256x1xf32>
    %24 = vector.broadcast %23 : vector<256x1xf32> to vector<256x256xf32>
    %25 = arith.mulf %20, %24 : vector<256x256xf32>
    %26 = arith.truncf %25 : vector<256x256xf32> to vector<256x256xbf16>
    %c0_11 = arith.constant 0 : index
    %c0_12 = arith.constant 0 : index
    %27 = vector.load %arg12[%c0_11, %c0_12] : memref<256x128xbf16, #tpu.memory_space<vmem>>, vector<256x128xbf16>
    %cst_13 = arith.constant dense<0.000000e+00> : vector<256x128xf32>
    %28 = tpu.matmul %26, %27, %cst_13 {dimension_numbers = #tpu.dot_dimension_numbers<[1], [0], [0], [1], [0, 0, 1, 1], [], []>} : vector<256x256xbf16>, vector<256x128xbf16>, vector<256x128xf32> -> vector<256x128xf32>
    %c0_14 = arith.constant 0 : index
    %c0_15 = arith.constant 0 : index
    %29 = memref.load %arg2[%c0_14, %c0_15] : memref<1x1xf32, #tpu.memory_space<smem>>
    %cst_16 = arith.constant 1.000000e+00 : f32
    %30 = arith.addf %cst_16, %29 : f32
    %31 = vector.broadcast %30 : f32 to vector<256x128xf32>
    %32 = arith.mulf %31, %28 : vector<256x128xf32>
    %c0_17 = arith.constant 0 : index
    %c0_18 = arith.constant 0 : index
    %c0_19 = arith.constant 0 : index
    %33 = vector.load %arg10[%c0_17, %c0_18, %c0_19] : memref<1x256x128xf32, #tpu.memory_space<vmem>>, vector<1x256x128xf32>
    %34 = vector.shape_cast %33 : vector<1x256x128xf32> to vector<256x128xf32>
    %35 = vector.shape_cast %32 : vector<256x128xf32> to vector<1x256x128xf32>
    tpu.vector_store %arg10[%c0_17, %c0_18, %c0_19], %35 {strides = array<i32>} : memref<1x256x128xf32, #tpu.memory_space<vmem>>, vector<1x256x128xf32>,
    return
  }
  func.func @transform_0(%arg0: i32, %arg1: i32) -> (i32, i32) {
    %c0_i32 = arith.constant 0 : i32
    %c0_i32_0 = arith.constant 0 : i32
    %c0_i32_1 = arith.constant 0 : i32
    return %c0_i32, %c0_i32_0 : i32, i32
  }
  func.func @transform_1(%arg0: i32, %arg1: i32) -> (i32, i32, i32) {
    %c0_i32 = arith.constant 0 : i32
    %c0_i32_0 = arith.constant 0 : i32
    %c0_i32_1 = arith.constant 0 : i32
    return %arg0, %c0_i32, %c0_i32_0 : i32, i32, i32
  }
  func.func @transform_2(%arg0: i32, %arg1: i32) -> (i32, i32) {
    %c0_i32 = arith.constant 0 : i32
    %c0_i32_0 = arith.constant 0 : i32
    %c0_i32_1 = arith.constant 0 : i32
    return %c0_i32, %c0_i32_0 : i32, i32
  }
  func.func @transform_3(%arg0: i32, %arg1: i32) -> (i32, i32) {
    %c0_i32 = arith.constant 0 : i32
    %c0_i32_0 = arith.constant 0 : i32
    %c0_i32_1 = arith.constant 0 : i32
    return %c0_i32, %c0_i32_0 : i32, i32
  }
  func.func @transform_4(%arg0: i32, %arg1: i32) -> (i32, i32) {
    %c0_i32 = arith.constant 0 : i32
    %c0_i32_0 = arith.constant 0 : i32
    %c0_i32_1 = arith.constant 0 : i32
    return %c0_i32, %c0_i32_0 : i32, i32
  }
  func.func @transform_5(%arg0: i32, %arg1: i32) -> (i32, i32) {
    %c0_i32 = arith.constant 0 : i32
    %c0_i32_0 = arith.constant 0 : i32
    %c0_i32_1 = arith.constant 0 : i32
    return %c0_i32, %c0_i32_0 : i32, i32
  }
  func.func @transform_6(%arg0: i32, %arg1: i32) -> (i32, i32) {
    %c0_i32 = arith.constant 0 : i32
    %c0_i32_0 = arith.constant 0 : i32
    %c0_i32_1 = arith.constant 0 : i32
    return %c0_i32, %c0_i32_0 : i32, i32
  }
  func.func @transform_7(%arg0: i32, %arg1: i32) -> (i32, i32) {
    %c0_i32 = arith.constant 0 : i32
    %c0_i32_0 = arith.constant 0 : i32
    %c0_i32_1 = arith.constant 0 : i32
    return %c0_i32, %c0_i32_0 : i32, i32
  }
  func.func @transform_8(%arg0: i32, %arg1: i32) -> (i32, i32, i32) {
    %c0_i32 = arith.constant 0 : i32
    %c0_i32_0 = arith.constant 0 : i32
    return %arg0, %arg1, %c0_i32 : i32, i32, i32
  }
}

</mosaic_0001>

<llo_original>
// kernel: tpu_custom_call.1
$region0: #{tpu_custom_call.1}
  #allocation0 [shape = 'u32[]', space=smem, size = 0x4, offset = 0x4, fixed_abs, tag = 'smem constant byte address 0x4 - core index']
  #allocation1 [shape = 'u32[144,128]{1,0:T(1,128)}', space=vmem, size = 0x12000, scoped, tag = 'internal scratch']
  #allocation2 [shape = 'bf16[256,16]{1,0:T(16,128)(2,1)}', space=vmem, size = 0x10000, scoped, tag = 'scratch operand']
  #allocation3 [shape = 'bf16[256,128]{1,0:T(16,128)(2,1)}', space=vmem, size = 0x10000, scoped, tag = 'scratch operand']
  #allocation4 [shape = 'f32[1,1]{1,0:T(1,128)S(6)}', space=smem, size = 0x200, scoped, tag = 'scoped memory for tpu_custom_call.1']
  %s0 = inlined_call_operand.<no memory space> [shape: f32[1,1], index: 0, kind: input, shape index: {}]
  %s1 = inlined_call_operand.hbm [shape: bf16[2,256,128], index: 1, kind: input, shape index: {}]
  %s2 = inlined_call_operand.hbm [shape: bf16[16,128], index: 2, kind: input, shape index: {}]
  %s3 = inlined_call_operand.vmem [shape: bf16[16,128], index: 3, kind: input, shape index: {}]
  %s4 = inlined_call_operand.hbm [shape: bf16[128,128], index: 4, kind: input, shape index: {}]
  %s5 = inlined_call_operand.vmem [shape: f32[1,16], index: 5, kind: input, shape index: {}]
  %s6 = inlined_call_operand.vmem [shape: f32[1,16], index: 6, kind: input, shape index: {}]
  %s7 = inlined_call_operand.vmem [shape: f32[1,128], index: 7, kind: input, shape index: {}]
  %s8 = inlined_call_operand.hbm [shape: f32[2,256,128], index: 8, kind: output, shape index: {}]
  %s9 = sld [smem:[#allocation0]]
  $region81: #{tpu_custom_call.1} parent=0
    _
  %s11 = ssub.s32 1, %s9
  %s12 = scalar_select 0, %s11, %s9
  %13 = sst [smem:[#allocation4]] %s0
  $region1: #{tpu_custom_call.1} parent=0
    #allocation5 [shape = 'u8[131072]{0}', space=vmem, size = 0x20000, scoped, tag = 'input window, operand 1']
    #allocation6 [shape = 's32[2]{0}', space=sflag, size = 0x8, scoped, tag = 'scoped memory for tpu_custom_call.1']
    #allocation7 [shape = 's32[2]{0}', space=sflag, size = 0x8, scoped, tag = 'scoped memory for tpu_custom_call.1']
    #allocation8 [shape = 'u8[4096]{0}', space=vmem, size = 0x1000, scoped, tag = 'input window, operand 2, single buffered']
    #allocation9 [shape = 's32[1]{0}', space=sflag, size = 0x4, scoped, tag = 'scoped memory for tpu_custom_call.1']
    #allocation10 [shape = 'u8[32768]{0}', space=vmem, size = 0x8000, scoped, tag = 'input window, operand 4, single buffered']
    #allocation11 [shape = 'u8[262144]{0}', space=vmem, size = 0x40000, scoped, tag = 'output window, operand 0']
    %14 = vsyncpa [#allocation6], 0
    %s15 = scalar_lea.sflag [#allocation6], 1
    %16 = vsyncpa %s15, 0
    %17 = vsyncpa [#allocation9], 0
    %18 = vsyncpa [#allocation7], 0
    %s19 = scalar_lea.sflag [#allocation7], 1
    %20 = vsyncpa %s19, 0
    loop: start=0, step=1, limit=4
    $region2: #{tpu_custom_call.1} parent=1 // loop_pre_header
      _
    $region3: #{tpu_custom_call.1} parent=1 // loop_header
      %s22 = sphi 0, %s26
      %p23 = scmp.ge.s32.totalorder %s22, 4
      %s29 = sphi 0, %s41
      %s30 = sphi 0, %s37
      %s31 = sphi 0, %s29
      %s32 = sphi 0, %s30
      %s33 = sphi 0, %s31
      %s34 = sphi 0, %s32
      %s42 = sphi 0, %s42
      %s44 = sphi 0, %s42
      %s45 = sphi 0, %s44
      %s59 = sphi 0, %s45
      %s65 = sphi 0, %s67
      %s68 = sphi 0, %s65
      %s69 = sphi 0, %s68
      %s85 = sphi 0, %s69
      %s89 = sphi 0, %s89
      %s91 = sphi 0, %s89
      %s92 = sphi 0, %s91
      %s106 = sphi 0, %s92
      %s110 = sphi 0, %s110
      %s112 = sphi 0, %s110
      %s113 = sphi 0, %s112
      %s127 = sphi 0, %s113
      %s131 = sphi 0, %s131
      %s133 = sphi 0, %s131
      %s134 = sphi 0, %s133
      %s148 = sphi 0, %s134
      %s152 = sphi 0, %s152
      %s154 = sphi 0, %s152
      %s155 = sphi 0, %s154
      %s169 = sphi 0, %s155
      %s173 = sphi 0, %s173
      %s175 = sphi 0, %s173
      %s176 = sphi 0, %s175
      %s190 = sphi 0, %s176
      %s194 = sphi 0, %s194
      %s196 = sphi 0, %s194
      %s197 = sphi 0, %s196
      %s211 = sphi 0, %s197
      %s219 = sphi 0, %s221
      %s222 = sphi 0, %s219
      %s223 = sphi 0, %s222
      %s239 = sphi 0, %s223
    $region4: #{tpu_custom_call.1} parent=1 // loop_header_branch
      %25 = sbr.rel (%p23) target = $region8
    $region5: #{tpu_custom_call.1} parent=1 // loop_body
      %s27 = ssub.s32 %s22, 1
      %s28 = ssub.s32 %s22, 2
      %s35 = sadd.s32 1, %s30
      %p36 = scmp.ge.s32.totalorder %s35, 1
      %s37 = scalar_select %p36, 0, %s35
      %s38 = sadd.s32 1, %s29
      %s39 = scalar_select %p36, %s38, %s29
      %p40 = scmp.ge.s32.totalorder %s39, 2
      %s41 = scalar_select %p40, 0, %s39
      %s43 = sadd.s32 %s42, 1
      %p46 = scmp.eq.s32.totalorder %s22, 1
      %p47 = scmp.ne.s32.totalorder %s42, %s44
      %p48 = scmp.eq.s32.totalorder %s22, 0
      %p49 = por %p47, %p48
      %p50 = scmp.ne.s32.totalorder %s42, %s44
      %p51 = scmp.eq.s32.totalorder %s27, 1
      %p52 = por %p50, %p51
      %p53 = scmp.ne.s32.totalorder %s44, %s45
      %p54 = scmp.eq.s32.totalorder %s27, 0
      %p55 = por %p53, %p54
      %p56 = scmp.ne.s32.totalorder %s44, %s45
      %p57 = scmp.eq.s32.totalorder %s28, 1
      %p58 = por %p56, %p57
      %p60 = scmp.ne.s32.totalorder %s45, %s59
      %p61 = scmp.eq.s32.totalorder %s28, 0
      %p62 = por %p60, %p61
      %s63 = ssub.s32 %s29, %s41
      %p64 = scmp.eq.s32.totalorder %s63, 0
      %s66 = sadd.s32 %s65, 1
      %s67 = scalar_select %p64, %s65, %s66
      %p70 = pneg %p64
      %p71 = scmp.eq.s32.totalorder %s22, 1
      %p72 = por %p70, %p71
      %p73 = scmp.ne.s32.totalorder %s65, %s68
      %p74 = scmp.eq.s32.totalorder %s22, 0
      %p75 = por %p73, %p74
      %p76 = scmp.ne.s32.totalorder %s65, %s68
      %p77 = scmp.eq.s32.totalorder %s27, 1
      %p78 = por %p76, %p77
      %p79 = scmp.ne.s32.totalorder %s68, %s69
      %p80 = scmp.eq.s32.totalorder %s27, 0
      %p81 = por %p79, %p80
      %p82 = scmp.ne.s32.totalorder %s68, %s69
      %p83 = scmp.eq.s32.totalorder %s28, 1
      %p84 = por %p82, %p83
      %p86 = scmp.ne.s32.totalorder %s69, %s85
      %p87 = scmp.eq.s32.totalorder %s28, 0
      %p88 = por %p86, %p87
      %s90 = sadd.s32 %s89, 1
      %p93 = scmp.eq.s32.totalorder %s22, 1
      %p94 = scmp.ne.s32.totalorder %s89, %s91
      %p95 = scmp.eq.s32.totalorder %s22, 0
      %p96 = por %p94, %p95
      %p97 = scmp.ne.s32.totalorder %s89, %s91
      %p98 = scmp.eq.s32.totalorder %s27, 1
      %p99 = por %p97, %p98
      %p100 = scmp.ne.s32.totalorder %s91, %s92
      %p101 = scmp.eq.s32.totalorder %s27, 0
      %p102 = por %p100, %p101
      %p103 = scmp.ne.s32.totalorder %s91, %s92
      %p104 = scmp.eq.s32.totalorder %s28, 1
      %p105 = por %p103, %p104
      %p107 = scmp.ne.s32.totalorder %s92, %s106
      %p108 = scmp.eq.s32.totalorder %s28, 0
      %p109 = por %p107, %p108
      %s111 = sadd.s32 %s110, 1
      %p114 = scmp.eq.s32.totalorder %s22, 1
      %p115 = scmp.ne.s32.totalorder %s110, %s112
      %p116 = scmp.eq.s32.totalorder %s22, 0
      %p117 = por %p115, %p116
      %p118 = scmp.ne.s32.totalorder %s110, %s112
      %p119 = scmp.eq.s32.totalorder %s27, 1
      %p120 = por %p118, %p119
      %p121 = scmp.ne.s32.totalorder %s112, %s113
      %p122 = scmp.eq.s32.totalorder %s27, 0
      %p123 = por %p121, %p122
      %p124 = scmp.ne.s32.totalorder %s112, %s113
      %p125 = scmp.eq.s32.totalorder %s28, 1
      %p126 = por %p124, %p125
      %p128 = scmp.ne.s32.totalorder %s113, %s127
      %p129 = scmp.eq.s32.totalorder %s28, 0
      %p130 = por %p128, %p129
      %s132 = sadd.s32 %s131, 1
      %p135 = scmp.eq.s32.totalorder %s22, 1
      %p136 = scmp.ne.s32.totalorder %s131, %s133
      %p137 = scmp.eq.s32.totalorder %s22, 0
      %p138 = por %p136, %p137
      %p139 = scmp.ne.s32.totalorder %s131, %s133
      %p140 = scmp.eq.s32.totalorder %s27, 1
      %p141 = por %p139, %p140
      %p142 = scmp.ne.s32.totalorder %s133, %s134
      %p143 = scmp.eq.s32.totalorder %s27, 0
      %p144 = por %p142, %p143
      %p145 = scmp.ne.s32.totalorder %s133, %s134
      %p146 = scmp.eq.s32.totalorder %s28, 1
      %p147 = por %p145, %p146
      %p149 = scmp.ne.s32.totalorder %s134, %s148
      %p150 = scmp.eq.s32.totalorder %s28, 0
      %p151 = por %p149, %p150
      %s153 = sadd.s32 %s152, 1
      %p156 = scmp.eq.s32.totalorder %s22, 1
      %p157 = scmp.ne.s32.totalorder %s152, %s154
      %p158 = scmp.eq.s32.totalorder %s22, 0
      %p159 = por %p157, %p158
      %p160 = scmp.ne.s32.totalorder %s152, %s154
      %p161 = scmp.eq.s32.totalorder %s27, 1
      %p162 = por %p160, %p161
      %p163 = scmp.ne.s32.totalorder %s154, %s155
      %p164 = scmp.eq.s32.totalorder %s27, 0
      %p165 = por %p163, %p164
      %p166 = scmp.ne.s32.totalorder %s154, %s155
      %p167 = scmp.eq.s32.totalorder %s28, 1
      %p168 = por %p166, %p167
      %p170 = scmp.ne.s32.totalorder %s155, %s169
      %p171 = scmp.eq.s32.totalorder %s28, 0
      %p172 = por %p170, %p171
      %s174 = sadd.s32 %s173, 1
      %p177 = scmp.eq.s32.totalorder %s22, 1
      %p178 = scmp.ne.s32.totalorder %s173, %s175
      %p179 = scmp.eq.s32.totalorder %s22, 0
      %p180 = por %p178, %p179
      %p181 = scmp.ne.s32.totalorder %s173, %s175
      %p182 = scmp.eq.s32.totalorder %s27, 1
      %p183 = por %p181, %p182
      %p184 = scmp.ne.s32.totalorder %s175, %s176
      %p185 = scmp.eq.s32.totalorder %s27, 0
      %p186 = por %p184, %p185
      %p187 = scmp.ne.s32.totalorder %s175, %s176
      %p188 = scmp.eq.s32.totalorder %s28, 1
      %p189 = por %p187, %p188
      %p191 = scmp.ne.s32.totalorder %s176, %s190
      %p192 = scmp.eq.s32.totalorder %s28, 0
      %p193 = por %p191, %p192
      %s195 = sadd.s32 %s194, 1
      %p198 = scmp.eq.s32.totalorder %s22, 1
      %p199 = scmp.ne.s32.totalorder %s194, %s196
      %p200 = scmp.eq.s32.totalorder %s22, 0
      %p201 = por %p199, %p200
      %p202 = scmp.ne.s32.totalorder %s194, %s196
      %p203 = scmp.eq.s32.totalorder %s27, 1
      %p204 = por %p202, %p203
      %p205 = scmp.ne.s32.totalorder %s196, %s197
      %p206 = scmp.eq.s32.totalorder %s27, 0
      %p207 = por %p205, %p206
      %p208 = scmp.ne.s32.totalorder %s196, %s197
      %p209 = scmp.eq.s32.totalorder %s28, 1
      %p210 = por %p208, %p209
      %p212 = scmp.ne.s32.totalorder %s197, %s211
      %p213 = scmp.eq.s32.totalorder %s28, 0
      %p214 = por %p212, %p213
      %s215 = ssub.s32 %s29, %s41
      %s216 = ssub.s32 %s30, %s37
      %s217 = sor.u32 %s215, %s216
      %p218 = scmp.eq.s32.totalorder %s217, 0
      %s220 = sadd.s32 %s219, 1
      %s221 = scalar_select %p218, %s219, %s220
      %p224 = pneg %p218
      %p225 = scmp.eq.s32.totalorder %s22, 1
      %p226 = por %p224, %p225
      %p227 = scmp.ne.s32.totalorder %s219, %s222
      %p228 = scmp.eq.s32.totalorder %s22, 0
      %p229 = por %p227, %p228
      %p230 = scmp.ne.s32.totalorder %s219, %s222
      %p231 = scmp.eq.s32.totalorder %s27, 1
      %p232 = por %p230, %p231
      %p233 = scmp.ne.s32.totalorder %s222, %s223
      %p234 = scmp.eq.s32.totalorder %s27, 0
      %p235 = por %p233, %p234
      %p236 = scmp.ne.s32.totalorder %s222, %s223
      %p237 = scmp.eq.s32.totalorder %s28, 1
      %p238 = por %p236, %p237
      %p240 = scmp.ne.s32.totalorder %s223, %s239
      %p241 = scmp.eq.s32.totalorder %s28, 0
      %p242 = por %p240, %p241
      %p243 = scmp.le.s32.totalorder 1, %s22
      %p244 = scmp.lt.s32.totalorder %s22, 3
      %p245 = pnand %p243, %p244
      %p246 = pneg %p245
      // Predicated region
      $region9: #{tpu_custom_call.1} parent=5 // pred_check
        _
      $region10: #{tpu_custom_call.1} parent=5 // pred_check_branch
        %248 = sbr.rel (%p245) target = $region12
      $region11: #{tpu_custom_call.1} parent=5 // pred_region
        %s249 = ssub.s32 %s22, 1
        // Predicated region
        $region13: #{tpu_custom_call.1} parent=11 // pred_check
          %p250 = pneg %p55
        $region14: #{tpu_custom_call.1} parent=11 // pred_check_branch
          %252 = sbr.rel (%p250) target = $region16
        $region15: #{tpu_custom_call.1} parent=11 // pred_region
          _
        $region16: #{tpu_custom_call.1} parent=11 // pred_fallthru
          _
        // Predicated region
        $region17: #{tpu_custom_call.1} parent=11 // pred_check
          %p253 = pneg %p102
        $region18: #{tpu_custom_call.1} parent=11 // pred_check_branch
          %255 = sbr.rel (%p253) target = $region20
        $region19: #{tpu_custom_call.1} parent=11 // pred_region
          %s257 = ssub.s32 128, 128
          %258 = vsyncadd [#allocation9], %s257
          %s259 = sshll.u32 [#allocation8], 4
          %s260 = int_to_ptr.vmem [resolvable:$true] %s259
          %265 = dma.hbm_to_vmem [thread:$0]  %s2, 128, %s260, [#allocation9], 64, 64, 4
        $region20: #{tpu_custom_call.1} parent=11 // pred_fallthru
          _
        // Predicated region
        $region21: #{tpu_custom_call.1} parent=11 // pred_check
          %p266 = pneg %p123
        $region22: #{tpu_custom_call.1} parent=11 // pred_check_branch
          %268 = sbr.rel (%p266) target = $region24
        $region23: #{tpu_custom_call.1} parent=11 // pred_region
          _
        $region24: #{tpu_custom_call.1} parent=11 // pred_fallthru
          _
        // Predicated region
        $region25: #{tpu_custom_call.1} parent=11 // pred_check
          %p269 = pneg %p144
        $region26: #{tpu_custom_call.1} parent=11 // pred_check_branch
          %271 = sbr.rel (%p269) target = $region28
        $region27: #{tpu_custom_call.1} parent=11 // pred_region
          %s273 = ssub.s32 1024, 1024
          %274 = vsyncadd [#allocation9], %s273
          %s275 = sshll.u32 [#allocation10], 4
          %s276 = int_to_ptr.vmem [resolvable:$true] %s275
          %281 = dma.hbm_to_vmem [thread:$0]  %s4, 1024, %s276, [#allocation9], 64, 64, 4
        $region28: #{tpu_custom_call.1} parent=11 // pred_fallthru
          _
        // Predicated region
        $region29: #{tpu_custom_call.1} parent=11 // pred_check
          %p282 = pneg %p165
        $region30: #{tpu_custom_call.1} parent=11 // pred_check_branch
          %284 = sbr.rel (%p282) target = $region32
        $region31: #{tpu_custom_call.1} parent=11 // pred_region
          _
        $region32: #{tpu_custom_call.1} parent=11 // pred_fallthru
          _
        // Predicated region
        $region33: #{tpu_custom_call.1} parent=11 // pred_check
          %p285 = pneg %p186
        $region34: #{tpu_custom_call.1} parent=11 // pred_check_branch
          %287 = sbr.rel (%p285) target = $region36
        $region35: #{tpu_custom_call.1} parent=11 // pred_region
          _
        $region36: #{tpu_custom_call.1} parent=11 // pred_fallthru
          _
        // Predicated region
        $region37: #{tpu_custom_call.1} parent=11 // pred_check
          %p288 = pneg %p207
        $region38: #{tpu_custom_call.1} parent=11 // pred_check_branch
          %290 = sbr.rel (%p288) target = $region40
        $region39: #{tpu_custom_call.1} parent=11 // pred_region
          _
        $region40: #{tpu_custom_call.1} parent=11 // pred_fallthru
          _
      $region12: #{tpu_custom_call.1} parent=5 // pred_fallthru
        _
      %p291 = scmp.lt.s32.totalorder %s22, 2
      // Predicated region
      $region41: #{tpu_custom_call.1} parent=5 // pred_check
        %p292 = pneg %p291
      $region42: #{tpu_custom_call.1} parent=5 // pred_check_branch
        %294 = sbr.rel (%p292) target = $region44
      $region43: #{tpu_custom_call.1} parent=5 // pred_region
        // Predicated region
        $region45: #{tpu_custom_call.1} parent=43 // pred_check
          %p295 = pneg %p75
        $region46: #{tpu_custom_call.1} parent=43 // pred_check_branch
          %297 = sbr.rel (%p295) target = $region48
        $region47: #{tpu_custom_call.1} parent=43 // pred_region
          %s298 = sand.u32 %s65, 1
          %s299 = scalar_lea.sflag [#allocation6], %s298
          %s300 = sand.u32 %s65, 1
          %s301 = smul.addr %s300, 128
          %s302 = scalar_lea.vmem [#allocation5], %s301
          %s304 = ssub.s32 2048, 2048
          %305 = vsyncadd %s299, %s304
          %s306 = smul.addr %s29, 32
          %s307 = smul.addr %s306, 64
          %s308 = scalar_lea.hbm %s1, %s307
          %s309 = sshll.u32 %s302, 4
          %s310 = int_to_ptr.vmem [resolvable:$true] %s309
          %315 = dma.hbm_to_vmem [thread:$0]  %s308, 2048, %s310, %s299, 64, 64, 4
        $region48: #{tpu_custom_call.1} parent=43 // pred_fallthru
          _
      $region44: #{tpu_custom_call.1} parent=5 // pred_fallthru
        _
      %p316 = scmp.le.s32.totalorder 1, %s22
      %p317 = scmp.lt.s32.totalorder %s22, 3
      %p318 = pnand %p316, %p317
      %p319 = pneg %p318
      // Predicated region
      $region49: #{tpu_custom_call.1} parent=5 // pred_check
        _
      $region50: #{tpu_custom_call.1} parent=5 // pred_check_branch
        %321 = sbr.rel (%p318) target = $region52
      $region51: #{tpu_custom_call.1} parent=5 // pred_region
        %s322 = ssub.s32 %s22, 1
        %s323 = sand.u32 %s68, 1
        %s324 = scalar_lea.sflag [#allocation6], %s323
        %s325 = sand.u32 %s68, 1
        %s326 = smul.addr %s325, 128
        %s327 = scalar_lea.vmem [#allocation5], %s326
        // Predicated region
        $region53: #{tpu_custom_call.1} parent=51 // pred_check
          %p328 = pneg %p81
        $region54: #{tpu_custom_call.1} parent=51 // pred_check_branch
          %330 = sbr.rel (%p328) target = $region56
        $region55: #{tpu_custom_call.1} parent=51 // pred_region
          %331 = dma.done %s324, 2048
        $region56: #{tpu_custom_call.1} parent=51 // pred_fallthru
          _
        // Predicated region
        $region57: #{tpu_custom_call.1} parent=51 // pred_check
          %p332 = pneg %p102
        $region58: #{tpu_custom_call.1} parent=51 // pred_check_branch
          %334 = sbr.rel (%p332) target = $region60
        $region59: #{tpu_custom_call.1} parent=51 // pred_region
          %335 = dma.done [#allocation9], 128
        $region60: #{tpu_custom_call.1} parent=51 // pred_fallthru
          _
        // Predicated region
        $region61: #{tpu_custom_call.1} parent=51 // pred_check
          %p336 = pneg %p144
        $region62: #{tpu_custom_call.1} parent=51 // pred_check_branch
          %338 = sbr.rel (%p336) target = $region64
        $region63: #{tpu_custom_call.1} parent=51 // pred_region
          %339 = dma.done [#allocation9], 1024
        $region64: #{tpu_custom_call.1} parent=51 // pred_fallthru
          _
        %p340 = pneg %p55
        %p341 = pneg %p52
        %s342 = sand.u32 %s68, 1
        %s343 = scalar_lea.sflag [#allocation6], %s342
        %s344 = sand.u32 %s68, 1
        %s345 = smul.addr %s344, 128
        %s346 = scalar_lea.vmem [#allocation5], %s345
        %p347 = pneg %p81
        %p348 = pneg %p78
        %p349 = pneg %p102
        %p350 = pneg %p99
        %p351 = pneg %p123
        %p352 = pneg %p120
        %p353 = pneg %p144
        %p354 = pneg %p141
        %p355 = pneg %p165
        %p356 = pneg %p162
        %p357 = pneg %p186
        %p358 = pneg %p183
        %p359 = pneg %p207
        %p360 = pneg %p204
        %p361 = pneg %p235
        %p362 = pneg %p232
        %s363 = sand.u32 %s222, 1
        %s364 = scalar_lea.sflag [#allocation7], %s363
        %s365 = sand.u32 %s222, 1
        %s366 = smul.addr %s365, 256
        %s367 = scalar_lea.vmem [#allocation11], %s366
        %s368 = smul.u32 32, %s32
        %p370 = scmp.eq.s32.totalorder %s32, 0
        // Predicated region
        $region65: #{tpu_custom_call.1} parent=51 // pred_check
          %p371 = pneg %p370
        $region66: #{tpu_custom_call.1} parent=51 // pred_check_branch
          %373 = sbr.rel (%p371) target = $region68
        $region67: #{tpu_custom_call.1} parent=51 // pred_region
          %v374 = vld [vmem:[%s327] sm:$0xf]
          %v375 = vld [vmem:[%s327 + $0x4] sm:$0xf]
          %v376 = vld [vmem:[%s327 + $0x8] sm:$0xf]
          %v377 = vld [vmem:[%s327 + $0xc] sm:$0xf]
          %v378 = vld [vmem:[%s327 + $0x10] sm:$0xf]
          %v379 = vld [vmem:[%s327 + $0x14] sm:$0xf]
          %v380 = vld [vmem:[%s327 + $0x18] sm:$0xf]
          %v381 = vld [vmem:[%s327 + $0x1c] sm:$0xf]
          %v382 = vld [vmem:[%s327 + $0x20] sm:$0xf]
          %v383 = vld [vmem:[%s327 + $0x24] sm:$0xf]
          %v384 = vld [vmem:[%s327 + $0x28] sm:$0xf]
          %v385 = vld [vmem:[%s327 + $0x2c] sm:$0xf]
          %v386 = vld [vmem:[%s327 + $0x30] sm:$0xf]
          %v387 = vld [vmem:[%s327 + $0x34] sm:$0xf]
          %v388 = vld [vmem:[%s327 + $0x38] sm:$0xf]
          %v389 = vld [vmem:[%s327 + $0x3c] sm:$0xf]
          %v390 = vld [vmem:[%s327 + $0x40] sm:$0xf]
          %v391 = vld [vmem:[%s327 + $0x44] sm:$0xf]
          %v392 = vld [vmem:[%s327 + $0x48] sm:$0xf]
          %v393 = vld [vmem:[%s327 + $0x4c] sm:$0xf]
          %v394 = vld [vmem:[%s327 + $0x50] sm:$0xf]
          %v395 = vld [vmem:[%s327 + $0x54] sm:$0xf]
          %v396 = vld [vmem:[%s327 + $0x58] sm:$0xf]
          %v397 = vld [vmem:[%s327 + $0x5c] sm:$0xf]
          %v398 = vld [vmem:[%s327 + $0x60] sm:$0xf]
          %v399 = vld [vmem:[%s327 + $0x64] sm:$0xf]
          %v400 = vld [vmem:[%s327 + $0x68] sm:$0xf]
          %v401 = vld [vmem:[%s327 + $0x6c] sm:$0xf]
          %v402 = vld [vmem:[%s327 + $0x70] sm:$0xf]
          %v403 = vld [vmem:[%s327 + $0x74] sm:$0xf]
          %v404 = vld [vmem:[%s327 + $0x78] sm:$0xf]
          %v405 = vld [vmem:[%s327 + $0x7c] sm:$0xf]
          %v406 = vld [vmem:[%s3] sm:$0xf]
          %v407 = vld [vmem:[%s3 + $0x4] sm:$0xf]
          %v408 = vld [vmem:[%s6] sm:$0x1]
          %v410 = vlaneseq
          %v411 = vshrl.u32 %v410, 7
          %v412 = vsub.s32 0, %v411
          %v413 = vrot.slane %v408, %v412
          %v447 = vunpack.c.l.b16 %v374
          %v448 = vunpack.c.l.b16 %v375
          %v449 = vunpack.c.l.b16 %v376
          %v450 = vunpack.c.l.b16 %v377
          %v451 = vunpack.c.l.b16 %v378
          %v452 = vunpack.c.l.b16 %v379
          %v453 = vunpack.c.l.b16 %v380
          %v454 = vunpack.c.l.b16 %v381
          %v455 = vunpack.c.l.b16 %v382
          %v456 = vunpack.c.l.b16 %v383
          %v457 = vunpack.c.l.b16 %v384
          %v458 = vunpack.c.l.b16 %v385
          %v459 = vunpack.c.l.b16 %v386
          %v460 = vunpack.c.l.b16 %v387
          %v461 = vunpack.c.l.b16 %v388
          %v462 = vunpack.c.l.b16 %v389
          %v463 = vunpack.c.l.b16 %v390
          %v464 = vunpack.c.l.b16 %v391
          %v465 = vunpack.c.l.b16 %v392
          %v466 = vunpack.c.l.b16 %v393
          %v467 = vunpack.c.l.b16 %v394
          %v468 = vunpack.c.l.b16 %v395
          %v469 = vunpack.c.l.b16 %v396
          %v470 = vunpack.c.l.b16 %v397
          %v471 = vunpack.c.l.b16 %v398
          %v472 = vunpack.c.l.b16 %v399
          %v473 = vunpack.c.l.b16 %v400
          %v474 = vunpack.c.l.b16 %v401
          %v475 = vunpack.c.l.b16 %v402
          %v476 = vunpack.c.l.b16 %v403
          %v477 = vunpack.c.l.b16 %v404
          %v478 = vunpack.c.l.b16 %v405
          %v479 = vpack.c.b16 %v448, %v447
          %v480 = vpack.c.b16 %v450, %v449
          %v481 = vpack.c.b16 %v452, %v451
          %v482 = vpack.c.b16 %v454, %v453
          %v483 = vpack.c.b16 %v456, %v455
          %v484 = vpack.c.b16 %v458, %v457
          %v485 = vpack.c.b16 %v460, %v459
          %v486 = vpack.c.b16 %v462, %v461
          %v487 = vpack.c.b16 %v464, %v463
          %v488 = vpack.c.b16 %v466, %v465
          %v489 = vpack.c.b16 %v468, %v467
          %v490 = vpack.c.b16 %v470, %v469
          %v491 = vpack.c.b16 %v472, %v471
          %v492 = vpack.c.b16 %v474, %v473
          %v493 = vpack.c.b16 %v476, %v475
          %v494 = vpack.c.b16 %v478, %v477
          %v513 = vunpack.c.l.b16 %v406
          %v514 = vunpack.c.l.b16 %v407
          %v515 = vpack.c.b16 %v514, %v513
          %517 = vmatprep.subr.bf16.mxu0 0
          %518 = vmatpush1.bf16.xpose.msra.mxu0 %v515
          %519 = vmatprep.subr.bf16.mxu0 0
          %520 = vmatpush1.bf16.xpose.msra.mxu0 0
          %521 = vmatprep.subr.bf16.mxu0 0
          %522 = vmatpush1.bf16.xpose.msra.mxu0 0
          %523 = vmatprep.subr.bf16.mxu0 0
          %524 = vmatpush1.bf16.xpose.msra.mxu0 0
          %525 = vmatprep.subr.bf16.mxu0 0
          %526 = vmatpush1.bf16.xpose.msra.mxu0 0
          %527 = vmatprep.subr.bf16.mxu0 0
          %528 = vmatpush1.bf16.xpose.msra.mxu0 0
          %529 = vmatprep.subr.bf16.mxu0 0
          %530 = vmatpush1.bf16.xpose.msra.mxu0 0
          %531 = vmatprep.subr.bf16.mxu0 0
          %532 = vmatpush1.bf16.xpose.msra.mxu0 0
          %533 = vmatprep.subr.bf16.mxu0 0
          %534 = vmatpush1.bf16.xpose.msra.mxu0 0
          %535 = vmatprep.subr.bf16.mxu0 0
          %536 = vmatpush1.bf16.xpose.msra.mxu0 0
          %537 = vmatprep.subr.bf16.mxu0 0
          %538 = vmatpush1.bf16.xpose.msra.mxu0 0
          %539 = vmatprep.subr.bf16.mxu0 0
          %540 = vmatpush1.bf16.xpose.msra.mxu0 0
          %541 = vmatprep.subr.bf16.mxu0 0
          %542 = vmatpush1.bf16.xpose.msra.mxu0 0
          %543 = vmatprep.subr.bf16.mxu0 0
          %544 = vmatpush1.bf16.xpose.msra.mxu0 0
          %545 = vmatprep.subr.bf16.mxu0 0
          %546 = vmatpush1.bf16.xpose.msra.mxu0 0
          %547 = vmatprep.subr.bf16.mxu0 0
          %548 = vmatpush1.bf16.xpose.msra.mxu0 0
          %549 = vmatprep.mubr.bf16.mxu0 0
          %550 = vmatmul.mubr.bf16.gmra.mrb[0].mxu0 %v479
          %v551 = vpop.f32.mrb[0].mxu0
          %v552 = vadd.f32 %v413, %v551
          %v553 = vpop.f32.mrb[0].mxu0
          %v554 = vpop.f32.mrb[0].mxu0
          %v555 = vadd.f32 %v413, %v554
          %v556 = vpop.f32.mrb[0].mxu0
          %557 = vmatprep.mubr.bf16.mxu0 0
          %558 = vmatmul.mubr.bf16.gmra.mrb[0].mxu0 %v480
          %v559 = vpop.f32.mrb[0].mxu0
          %v560 = vadd.f32 %v413, %v559
          %v561 = vpop.f32.mrb[0].mxu0
          %v562 = vpop.f32.mrb[0].mxu0
          %v563 = vadd.f32 %v413, %v562
          %v564 = vpop.f32.mrb[0].mxu0
          %565 = vmatprep.mubr.bf16.mxu0 0
          %566 = vmatmul.mubr.bf16.gmra.mrb[0].mxu0 %v481
          %v567 = vpop.f32.mrb[0].mxu0
          %v568 = vadd.f32 %v413, %v567
          %v569 = vpop.f32.mrb[0].mxu0
          %v570 = vpop.f32.mrb[0].mxu0
          %v571 = vadd.f32 %v413, %v570
          %v572 = vpop.f32.mrb[0].mxu0
          %573 = vmatprep.mubr.bf16.mxu0 0
          %574 = vmatmul.mubr.bf16.gmra.mrb[0].mxu0 %v482
          %v575 = vpop.f32.mrb[0].mxu0
          %v576 = vadd.f32 %v413, %v575
          %v577 = vpop.f32.mrb[0].mxu0
          %v578 = vpop.f32.mrb[0].mxu0
          %v579 = vadd.f32 %v413, %v578
          %v580 = vpop.f32.mrb[0].mxu0
          %581 = vmatprep.mubr.bf16.mxu0 0
          %582 = vmatmul.mubr.bf16.gmra.mrb[0].mxu0 %v483
          %v583 = vpop.f32.mrb[0].mxu0
          %v584 = vadd.f32 %v413, %v583
          %v585 = vpop.f32.mrb[0].mxu0
          %v586 = vpop.f32.mrb[0].mxu0
          %v587 = vadd.f32 %v413, %v586
          %v588 = vpop.f32.mrb[0].mxu0
          %589 = vmatprep.mubr.bf16.mxu0 0
          %590 = vmatmul.mubr.bf16.gmra.mrb[0].mxu0 %v484
          %v591 = vpop.f32.mrb[0].mxu0
          %v592 = vadd.f32 %v413, %v591
          %v593 = vpop.f32.mrb[0].mxu0
          %v594 = vpop.f32.mrb[0].mxu0
          %v595 = vadd.f32 %v413, %v594
          %v596 = vpop.f32.mrb[0].mxu0
          %597 = vmatprep.mubr.bf16.mxu0 0
          %598 = vmatmul.mubr.bf16.gmra.mrb[0].mxu0 %v485
          %v599 = vpop.f32.mrb[0].mxu0
          %v600 = vadd.f32 %v413, %v599
          %v601 = vpop.f32.mrb[0].mxu0
          %v602 = vpop.f32.mrb[0].mxu0
          %v603 = vadd.f32 %v413, %v602
          %v604 = vpop.f32.mrb[0].mxu0
          %605 = vmatprep.mubr.bf16.mxu0 0
          %606 = vmatmul.mubr.bf16.gmra.mrb[0].mxu0 %v486
          %v607 = vpop.f32.mrb[0].mxu0
          %v608 = vadd.f32 %v413, %v607
          %v609 = vpop.f32.mrb[0].mxu0
          %v610 = vpop.f32.mrb[0].mxu0
          %v611 = vadd.f32 %v413, %v610
          %v612 = vpop.f32.mrb[0].mxu0
          %613 = vmatprep.mubr.bf16.mxu0 0
          %614 = vmatmul.mubr.bf16.gmra.mrb[0].mxu0 %v487
          %v615 = vpop.f32.mrb[0].mxu0
          %v616 = vadd.f32 %v413, %v615
          %v617 = vpop.f32.mrb[0].mxu0
          %v618 = vpop.f32.mrb[0].mxu0
          %v619 = vadd.f32 %v413, %v618
          %v620 = vpop.f32.mrb[0].mxu0
          %621 = vmatprep.mubr.bf16.mxu0 0
          %622 = vmatmul.mubr.bf16.gmra.mrb[0].mxu0 %v488
          %v623 = vpop.f32.mrb[0].mxu0
          %v624 = vadd.f32 %v413, %v623
          %v625 = vpop.f32.mrb[0].mxu0
          %v626 = vpop.f32.mrb[0].mxu0
          %v627 = vadd.f32 %v413, %v626
          %v628 = vpop.f32.mrb[0].mxu0
          %629 = vmatprep.mubr.bf16.mxu0 0
          %630 = vmatmul.mubr.bf16.gmra.mrb[0].mxu0 %v489
          %v631 = vpop.f32.mrb[0].mxu0
          %v632 = vadd.f32 %v413, %v631
          %v633 = vpop.f32.mrb[0].mxu0
          %v634 = vpop.f32.mrb[0].mxu0
          %v635 = vadd.f32 %v413, %v634
          %v636 = vpop.f32.mrb[0].mxu0
          %637 = vmatprep.mubr.bf16.mxu0 0
          %638 = vmatmul.mubr.bf16.gmra.mrb[0].mxu0 %v490
          %v639 = vpop.f32.mrb[0].mxu0
          %v640 = vadd.f32 %v413, %v639
          %v641 = vpop.f32.mrb[0].mxu0
          %v642 = vpop.f32.mrb[0].mxu0
          %v643 = vadd.f32 %v413, %v642
          %v644 = vpop.f32.mrb[0].mxu0
          %645 = vmatprep.mubr.bf16.mxu0 0
          %646 = vmatmul.mubr.bf16.gmra.mrb[0].mxu0 %v491
          %v647 = vpop.f32.mrb[0].mxu0
          %v648 = vadd.f32 %v413, %v647
          %v649 = vpop.f32.mrb[0].mxu0
          %v650 = vpop.f32.mrb[0].mxu0
          %v651 = vadd.f32 %v413, %v650
          %v652 = vpop.f32.mrb[0].mxu0
          %653 = vmatprep.mubr.bf16.mxu0 0
          %654 = vmatmul.mubr.bf16.gmra.mrb[0].mxu0 %v492
          %v655 = vpop.f32.mrb[0].mxu0
          %v656 = vadd.f32 %v413, %v655
          %v657 = vpop.f32.mrb[0].mxu0
          %v658 = vpop.f32.mrb[0].mxu0
          %v659 = vadd.f32 %v413, %v658
          %v660 = vpop.f32.mrb[0].mxu0
          %661 = vmatprep.mubr.bf16.mxu0 0
          %662 = vmatmul.mubr.bf16.gmra.mrb[0].mxu0 %v493
          %v663 = vpop.f32.mrb[0].mxu0
          %v664 = vadd.f32 %v413, %v663
          %v665 = vpop.f32.mrb[0].mxu0
          %v666 = vpop.f32.mrb[0].mxu0
          %v667 = vadd.f32 %v413, %v666
          %v668 = vpop.f32.mrb[0].mxu0
          %669 = vmatprep.mubr.bf16.mxu0 0
          %670 = vmatmul.mubr.bf16.gmra.mrb[0].mxu0 %v494
          %v671 = vpop.f32.mrb[0].mxu0
          %v672 = vadd.f32 %v413, %v671
          %v673 = vpop.f32.mrb[0].mxu0
          %v674 = vpop.f32.mrb[0].mxu0
          %v675 = vadd.f32 %v413, %v674
          %v676 = vpop.f32.mrb[0].mxu0
          %677 = vdwg.mxu0
          %v678 = vpack.c.bf16 %v555, %v552
          %v679 = vpack.c.bf16 %v563, %v560
          %v680 = vpack.c.bf16 %v571, %v568
          %v681 = vpack.c.bf16 %v579, %v576
          %v682 = vpack.c.bf16 %v587, %v584
          %v683 = vpack.c.bf16 %v595, %v592
          %v684 = vpack.c.bf16 %v603, %v600
          %v685 = vpack.c.bf16 %v611, %v608
          %v686 = vpack.c.bf16 %v619, %v616
          %v687 = vpack.c.bf16 %v627, %v624
          %v688 = vpack.c.bf16 %v635, %v632
          %v689 = vpack.c.bf16 %v643, %v640
          %v690 = vpack.c.bf16 %v651, %v648
          %v691 = vpack.c.bf16 %v659, %v656
          %v692 = vpack.c.bf16 %v667, %v664
          %v693 = vpack.c.bf16 %v675, %v672
          %vm694 = vcmask 130048
          %695 = vst.msk [vmem:[#allocation2] sm:$0xff] %vm694, %v678
          %696 = vst.msk [vmem:[#allocation2 + $0x8] sm:$0xff] %vm694, %v679
          %697 = vst.msk [vmem:[#allocation2 + $0x10] sm:$0xff] %vm694, %v680
          %698 = vst.msk [vmem:[#allocation2 + $0x18] sm:$0xff] %vm694, %v681
          %699 = vst.msk [vmem:[#allocation2 + $0x20] sm:$0xff] %vm694, %v682
          %700 = vst.msk [vmem:[#allocation2 + $0x28] sm:$0xff] %vm694, %v683
          %701 = vst.msk [vmem:[#allocation2 + $0x30] sm:$0xff] %vm694, %v684
          %702 = vst.msk [vmem:[#allocation2 + $0x38] sm:$0xff] %vm694, %v685
          %703 = vst.msk [vmem:[#allocation2 + $0x40] sm:$0xff] %vm694, %v686
          %704 = vst.msk [vmem:[#allocation2 + $0x48] sm:$0xff] %vm694, %v687
          %705 = vst.msk [vmem:[#allocation2 + $0x50] sm:$0xff] %vm694, %v688
          %706 = vst.msk [vmem:[#allocation2 + $0x58] sm:$0xff] %vm694, %v689
          %707 = vst.msk [vmem:[#allocation2 + $0x60] sm:$0xff] %vm694, %v690
          %708 = vst.msk [vmem:[#allocation2 + $0x68] sm:$0xff] %vm694, %v691
          %709 = vst.msk [vmem:[#allocation2 + $0x70] sm:$0xff] %vm694, %v692
          %710 = vst.msk [vmem:[#allocation2 + $0x78] sm:$0xff] %vm694, %v693
          %v711 = vld [vmem:[#allocation10] sm:$0xf]
          %v712 = vld [vmem:[#allocation10 + $0x4] sm:$0xf]
          %v713 = vld [vmem:[#allocation10 + $0x8] sm:$0xf]
          %v714 = vld [vmem:[#allocation10 + $0xc] sm:$0xf]
          %v715 = vld [vmem:[#allocation10 + $0x10] sm:$0xf]
          %v716 = vld [vmem:[#allocation10 + $0x14] sm:$0xf]
          %v717 = vld [vmem:[#allocation10 + $0x18] sm:$0xf]
          %v718 = vld [vmem:[#allocation10 + $0x1c] sm:$0xf]
          %v719 = vld [vmem:[#allocation10 + $0x20] sm:$0xf]
          %v720 = vld [vmem:[#allocation10 + $0x24] sm:$0xf]
          %v721 = vld [vmem:[#allocation10 + $0x28] sm:$0xf]
          %v722 = vld [vmem:[#allocation10 + $0x2c] sm:$0xf]
          %v723 = vld [vmem:[#allocation10 + $0x30] sm:$0xf]
          %v724 = vld [vmem:[#allocation10 + $0x34] sm:$0xf]
          %v725 = vld [vmem:[#allocation10 + $0x38] sm:$0xf]
          %v726 = vld [vmem:[#allocation10 + $0x3c] sm:$0xf]
          %v727 = vld [vmem:[%s7] sm:$0x1]
          %v729 = vlaneseq
          %v730 = vshrl.u32 %v729, 7
          %v731 = vsub.s32 0, %v730
          %v732 = vrot.slane %v727, %v731
          %v750 = vunpack.c.l.b16 %v711
          %v751 = vunpack.c.l.b16 %v712
          %v752 = vunpack.c.l.b16 %v713
          %v753 = vunpack.c.l.b16 %v714
          %v754 = vunpack.c.l.b16 %v715
          %v755 = vunpack.c.l.b16 %v716
          %v756 = vunpack.c.l.b16 %v717
          %v757 = vunpack.c.l.b16 %v718
          %v758 = vunpack.c.l.b16 %v719
          %v759 = vunpack.c.l.b16 %v720
          %v760 = vunpack.c.l.b16 %v721
          %v761 = vunpack.c.l.b16 %v722
          %v762 = vunpack.c.l.b16 %v723
          %v763 = vunpack.c.l.b16 %v724
          %v764 = vunpack.c.l.b16 %v725
          %v765 = vunpack.c.l.b16 %v726
          %v766 = vpack.c.b16 %v751, %v750
          %v767 = vpack.c.b16 %v753, %v752
          %v768 = vpack.c.b16 %v755, %v754
          %v769 = vpack.c.b16 %v757, %v756
          %v770 = vpack.c.b16 %v759, %v758
          %v771 = vpack.c.b16 %v761, %v760
          %v772 = vpack.c.b16 %v763, %v762
          %v773 = vpack.c.b16 %v765, %v764
          %782 = vmatprep.subr.bf16.mxu0 0
          %783 = vmatpush1.bf16.xpose.msra.mxu0 %v766
          %784 = vmatprep.subr.bf16.mxu0 0
          %785 = vmatpush1.bf16.xpose.msra.mxu0 %v767
          %786 = vmatprep.subr.bf16.mxu0 0
          %787 = vmatpush1.bf16.xpose.msra.mxu0 %v768
          %788 = vmatprep.subr.bf16.mxu0 0
          %789 = vmatpush1.bf16.xpose.msra.mxu0 %v769
          %790 = vmatprep.subr.bf16.mxu0 0
          %791 = vmatpush1.bf16.xpose.msra.mxu0 %v770
          %792 = vmatprep.subr.bf16.mxu0 0
          %793 = vmatpush1.bf16.xpose.msra.mxu0 %v771
          %794 = vmatprep.subr.bf16.mxu0 0
          %795 = vmatpush1.bf16.xpose.msra.mxu0 %v772
          %796 = vmatprep.subr.bf16.mxu0 0
          %797 = vmatpush1.bf16.xpose.msra.mxu0 %v773
          %798 = vmatprep.subr.bf16.mxu0 0
          %799 = vmatpush1.bf16.xpose.msra.mxu0 0
          %800 = vmatprep.subr.bf16.mxu0 0
          %801 = vmatpush1.bf16.xpose.msra.mxu0 0
          %802 = vmatprep.subr.bf16.mxu0 0
          %803 = vmatpush1.bf16.xpose.msra.mxu0 0
          %804 = vmatprep.subr.bf16.mxu0 0
          %805 = vmatpush1.bf16.xpose.msra.mxu0 0
          %806 = vmatprep.subr.bf16.mxu0 0
          %807 = vmatpush1.bf16.xpose.msra.mxu0 0
          %808 = vmatprep.subr.bf16.mxu0 0
          %809 = vmatpush1.bf16.xpose.msra.mxu0 0
          %810 = vmatprep.subr.bf16.mxu0 0
          %811 = vmatpush1.bf16.xpose.msra.mxu0 0
          %812 = vmatprep.subr.bf16.mxu0 0
          %813 = vmatpush1.bf16.xpose.msra.mxu0 0
          %814 = vmatprep.mubr.bf16.mxu0 0
          %815 = vmatmul.mubr.bf16.gmra.mrb[0].mxu0 %v479
          %v816 = vpop.f32.mrb[0].mxu0
          %v817 = vadd.f32 %v732, %v816
          %v818 = vpop.f32.mrb[0].mxu0
          %v819 = vpop.f32.mrb[0].mxu0
          %v820 = vadd.f32 %v732, %v819
          %v821 = vpop.f32.mrb[0].mxu0
          %822 = vmatprep.mubr.bf16.mxu0 0
          %823 = vmatmul.mubr.bf16.gmra.mrb[0].mxu0 %v480
          %v824 = vpop.f32.mrb[0].mxu0
          %v825 = vadd.f32 %v732, %v824
          %v826 = vpop.f32.mrb[0].mxu0
          %v827 = vpop.f32.mrb[0].mxu0
          %v828 = vadd.f32 %v732, %v827
          %v829 = vpop.f32.mrb[0].mxu0
          %830 = vmatprep.mubr.bf16.mxu0 0
          %831 = vmatmul.mubr.bf16.gmra.mrb[0].mxu0 %v481
          %v832 = vpop.f32.mrb[0].mxu0
          %v833 = vadd.f32 %v732, %v832
          %v834 = vpop.f32.mrb[0].mxu0
          %v835 = vpop.f32.mrb[0].mxu0
          %v836 = vadd.f32 %v732, %v835
          %v837 = vpop.f32.mrb[0].mxu0
          %838 = vmatprep.mubr.bf16.mxu0 0
          %839 = vmatmul.mubr.bf16.gmra.mrb[0].mxu0 %v482
          %v840 = vpop.f32.mrb[0].mxu0
          %v841 = vadd.f32 %v732, %v840
          %v842 = vpop.f32.mrb[0].mxu0
          %v843 = vpop.f32.mrb[0].mxu0
          %v844 = vadd.f32 %v732, %v843
          %v845 = vpop.f32.mrb[0].mxu0
          %846 = vmatprep.mubr.bf16.mxu0 0
          %847 = vmatmul.mubr.bf16.gmra.mrb[0].mxu0 %v483
          %v848 = vpop.f32.mrb[0].mxu0
          %v849 = vadd.f32 %v732, %v848
          %v850 = vpop.f32.mrb[0].mxu0
          %v851 = vpop.f32.mrb[0].mxu0
          %v852 = vadd.f32 %v732, %v851
          %v853 = vpop.f32.mrb[0].mxu0
          %854 = vmatprep.mubr.bf16.mxu0 0
          %855 = vmatmul.mubr.bf16.gmra.mrb[0].mxu0 %v484
          %v856 = vpop.f32.mrb[0].mxu0
          %v857 = vadd.f32 %v732, %v856
          %v858 = vpop.f32.mrb[0].mxu0
          %v859 = vpop.f32.mrb[0].mxu0
          %v860 = vadd.f32 %v732, %v859
          %v861 = vpop.f32.mrb[0].mxu0
          %862 = vmatprep.mubr.bf16.mxu0 0
          %863 = vmatmul.mubr.bf16.gmra.mrb[0].mxu0 %v485
          %v864 = vpop.f32.mrb[0].mxu0
          %v865 = vadd.f32 %v732, %v864
          %v866 = vpop.f32.mrb[0].mxu0
          %v867 = vpop.f32.mrb[0].mxu0
          %v868 = vadd.f32 %v732, %v867
          %v869 = vpop.f32.mrb[0].mxu0
          %870 = vmatprep.mubr.bf16.mxu0 0
          %871 = vmatmul.mubr.bf16.gmra.mrb[0].mxu0 %v486
          %v872 = vpop.f32.mrb[0].mxu0
          %v873 = vadd.f32 %v732, %v872
          %v874 = vpop.f32.mrb[0].mxu0
          %v875 = vpop.f32.mrb[0].mxu0
          %v876 = vadd.f32 %v732, %v875
          %v877 = vpop.f32.mrb[0].mxu0
          %878 = vmatprep.mubr.bf16.mxu0 0
          %879 = vmatmul.mubr.bf16.gmra.mrb[0].mxu0 %v487
          %v880 = vpop.f32.mrb[0].mxu0
          %v881 = vadd.f32 %v732, %v880
          %v882 = vpop.f32.mrb[0].mxu0
          %v883 = vpop.f32.mrb[0].mxu0
          %v884 = vadd.f32 %v732, %v883
          %v885 = vpop.f32.mrb[0].mxu0
          %886 = vmatprep.mubr.bf16.mxu0 0
          %887 = vmatmul.mubr.bf16.gmra.mrb[0].mxu0 %v488
          %v888 = vpop.f32.mrb[0].mxu0
          %v889 = vadd.f32 %v732, %v888
          %v890 = vpop.f32.mrb[0].mxu0
          %v891 = vpop.f32.mrb[0].mxu0
          %v892 = vadd.f32 %v732, %v891
          %v893 = vpop.f32.mrb[0].mxu0
          %894 = vmatprep.mubr.bf16.mxu0 0
          %895 = vmatmul.mubr.bf16.gmra.mrb[0].mxu0 %v489
          %v896 = vpop.f32.mrb[0].mxu0
          %v897 = vadd.f32 %v732, %v896
          %v898 = vpop.f32.mrb[0].mxu0
          %v899 = vpop.f32.mrb[0].mxu0
          %v900 = vadd.f32 %v732, %v899
          %v901 = vpop.f32.mrb[0].mxu0
          %902 = vmatprep.mubr.bf16.mxu0 0
          %903 = vmatmul.mubr.bf16.gmra.mrb[0].mxu0 %v490
          %v904 = vpop.f32.mrb[0].mxu0
          %v905 = vadd.f32 %v732, %v904
          %v906 = vpop.f32.mrb[0].mxu0
          %v907 = vpop.f32.mrb[0].mxu0
          %v908 = vadd.f32 %v732, %v907
          %v909 = vpop.f32.mrb[0].mxu0
          %910 = vmatprep.mubr.bf16.mxu0 0
          %911 = vmatmul.mubr.bf16.gmra.mrb[0].mxu0 %v491
          %v912 = vpop.f32.mrb[0].mxu0
          %v913 = vadd.f32 %v732, %v912
          %v914 = vpop.f32.mrb[0].mxu0
          %v915 = vpop.f32.mrb[0].mxu0
          %v916 = vadd.f32 %v732, %v915
          %v917 = vpop.f32.mrb[0].mxu0
          %918 = vmatprep.mubr.bf16.mxu0 0
          %919 = vmatmul.mubr.bf16.gmra.mrb[0].mxu0 %v492
          %v920 = vpop.f32.mrb[0].mxu0
          %v921 = vadd.f32 %v732, %v920
          %v922 = vpop.f32.mrb[0].mxu0
          %v923 = vpop.f32.mrb[0].mxu0
          %v924 = vadd.f32 %v732, %v923
          %v925 = vpop.f32.mrb[0].mxu0
          %926 = vmatprep.mubr.bf16.mxu0 0
          %927 = vmatmul.mubr.bf16.gmra.mrb[0].mxu0 %v493
          %v928 = vpop.f32.mrb[0].mxu0
          %v929 = vadd.f32 %v732, %v928
          %v930 = vpop.f32.mrb[0].mxu0
          %v931 = vpop.f32.mrb[0].mxu0
          %v932 = vadd.f32 %v732, %v931
          %v933 = vpop.f32.mrb[0].mxu0
          %934 = vmatprep.mubr.bf16.mxu0 0
          %935 = vmatmul.mubr.bf16.gmra.mrb[0].mxu0 %v494
          %v936 = vpop.f32.mrb[0].mxu0
          %v937 = vadd.f32 %v732, %v936
          %v938 = vpop.f32.mrb[0].mxu0
          %v939 = vpop.f32.mrb[0].mxu0
          %v940 = vadd.f32 %v732, %v939
          %v941 = vpop.f32.mrb[0].mxu0
          %942 = vdwg.mxu0
          %v943 = vpack.c.bf16 %v820, %v817
          %v944 = vpack.c.bf16 %v828, %v825
          %v945 = vpack.c.bf16 %v836, %v833
          %v946 = vpack.c.bf16 %v844, %v841
          %v947 = vpack.c.bf16 %v852, %v849
          %v948 = vpack.c.bf16 %v860, %v857
          %v949 = vpack.c.bf16 %v868, %v865
          %v950 = vpack.c.bf16 %v876, %v873
          %v951 = vpack.c.bf16 %v884, %v881
          %v952 = vpack.c.bf16 %v892, %v889
          %v953 = vpack.c.bf16 %v900, %v897
          %v954 = vpack.c.bf16 %v908, %v905
          %v955 = vpack.c.bf16 %v916, %v913
          %v956 = vpack.c.bf16 %v924, %v921
          %v957 = vpack.c.bf16 %v932, %v929
          %v958 = vpack.c.bf16 %v940, %v937
          %959 = vst [vmem:[#allocation3] sm:$0xff] %v943
          %960 = vst [vmem:[#allocation3 + $0x8] sm:$0xff] %v944
          %961 = vst [vmem:[#allocation3 + $0x10] sm:$0xff] %v945
          %962 = vst [vmem:[#allocation3 + $0x18] sm:$0xff] %v946
          %963 = vst [vmem:[#allocation3 + $0x20] sm:$0xff] %v947
          %964 = vst [vmem:[#allocation3 + $0x28] sm:$0xff] %v948
          %965 = vst [vmem:[#allocation3 + $0x30] sm:$0xff] %v949
          %966 = vst [vmem:[#allocation3 + $0x38] sm:$0xff] %v950
          %967 = vst [vmem:[#allocation3 + $0x40] sm:$0xff] %v951
          %968 = vst [vmem:[#allocation3 + $0x48] sm:$0xff] %v952
          %969 = vst [vmem:[#allocation3 + $0x50] sm:$0xff] %v953
          %970 = vst [vmem:[#allocation3 + $0x58] sm:$0xff] %v954
          %971 = vst [vmem:[#allocation3 + $0x60] sm:$0xff] %v955
          %972 = vst [vmem:[#allocation3 + $0x68] sm:$0xff] %v956
          %973 = vst [vmem:[#allocation3 + $0x70] sm:$0xff] %v957
          %974 = vst [vmem:[#allocation3 + $0x78] sm:$0xff] %v958
        $region68: #{tpu_custom_call.1} parent=51 // pred_fallthru
          _
        %s975 = smul.u32 %s32, 256
        %s976 = sshra.s32 %s975, 3
        %s977 = sand.u32 %s975, 7
        %s978 = smul.addr %s976, 4
        %s979 = scalar_lea.vmem %s327, %s978 [#allocation5]
        %v980 = vld [vmem:[%s979] sm:$0xf]
        %v981 = vld [vmem:[%s979 + $0x4] sm:$0xf]
        %v982 = vld [vmem:[%s979 + $0x8] sm:$0xf]
        %v983 = vld [vmem:[%s979 + $0xc] sm:$0xf]
        %v984 = vld [vmem:[%s979 + $0x10] sm:$0xf]
        %v985 = vld [vmem:[%s979 + $0x14] sm:$0xf]
        %v986 = vld [vmem:[%s979 + $0x18] sm:$0xf]
        %v987 = vld [vmem:[%s979 + $0x1c] sm:$0xf]
        %v988 = vld [vmem:[%s979 + $0x20] sm:$0xf]
        %v989 = vld [vmem:[%s979 + $0x24] sm:$0xf]
        %v990 = vld [vmem:[%s979 + $0x28] sm:$0xf]
        %v991 = vld [vmem:[%s979 + $0x2c] sm:$0xf]
        %v992 = vld [vmem:[%s979 + $0x30] sm:$0xf]
        %v993 = vld [vmem:[%s979 + $0x34] sm:$0xf]
        %v994 = vld [vmem:[%s979 + $0x38] sm:$0xf]
        %v995 = vld [vmem:[%s979 + $0x3c] sm:$0xf]
        %v996 = vld [vmem:[%s979 + $0x40] sm:$0xf]
        %v997 = vld [vmem:[%s979 + $0x44] sm:$0xf]
        %v998 = vld [vmem:[%s979 + $0x48] sm:$0xf]
        %v999 = vld [vmem:[%s979 + $0x4c] sm:$0xf]
        %v1000 = vld [vmem:[%s979 + $0x50] sm:$0xf]
        %v1001 = vld [vmem:[%s979 + $0x54] sm:$0xf]
        %v1002 = vld [vmem:[%s979 + $0x58] sm:$0xf]
        %v1003 = vld [vmem:[%s979 + $0x5c] sm:$0xf]
        %v1004 = vld [vmem:[%s979 + $0x60] sm:$0xf]
        %v1005 = vld [vmem:[%s979 + $0x64] sm:$0xf]
        %v1006 = vld [vmem:[%s979 + $0x68] sm:$0xf]
        %v1007 = vld [vmem:[%s979 + $0x6c] sm:$0xf]
        %v1008 = vld [vmem:[%s979 + $0x70] sm:$0xf]
        %v1009 = vld [vmem:[%s979 + $0x74] sm:$0xf]
        %v1010 = vld [vmem:[%s979 + $0x78] sm:$0xf]
        %v1011 = vld [vmem:[%s979 + $0x7c] sm:$0xf]
        %v1012 = vld [vmem:[#allocation8] sm:$0xf]
        %v1013 = vld [vmem:[#allocation8 + $0x4] sm:$0xf]
        %v1014 = vld [vmem:[%s5] sm:$0x1]
        %v1016 = vlaneseq
        %v1017 = vshrl.u32 %v1016, 7
        %v1018 = vsub.s32 0, %v1017
        %v1019 = vrot.slane %v1014, %v1018
        %v1053 = vunpack.c.l.b16 %v980
        %v1054 = vunpack.c.l.b16 %v981
        %v1055 = vunpack.c.l.b16 %v982
        %v1056 = vunpack.c.l.b16 %v983
        %v1057 = vunpack.c.l.b16 %v984
        %v1058 = vunpack.c.l.b16 %v985
        %v1059 = vunpack.c.l.b16 %v986
        %v1060 = vunpack.c.l.b16 %v987
        %v1061 = vunpack.c.l.b16 %v988
        %v1062 = vunpack.c.l.b16 %v989
        %v1063 = vunpack.c.l.b16 %v990
        %v1064 = vunpack.c.l.b16 %v991
        %v1065 = vunpack.c.l.b16 %v992
        %v1066 = vunpack.c.l.b16 %v993
        %v1067 = vunpack.c.l.b16 %v994
        %v1068 = vunpack.c.l.b16 %v995
        %v1069 = vunpack.c.l.b16 %v996
        %v1070 = vunpack.c.l.b16 %v997
        %v1071 = vunpack.c.l.b16 %v998
        %v1072 = vunpack.c.l.b16 %v999
        %v1073 = vunpack.c.l.b16 %v1000
        %v1074 = vunpack.c.l.b16 %v1001
        %v1075 = vunpack.c.l.b16 %v1002
        %v1076 = vunpack.c.l.b16 %v1003
        %v1077 = vunpack.c.l.b16 %v1004
        %v1078 = vunpack.c.l.b16 %v1005
        %v1079 = vunpack.c.l.b16 %v1006
        %v1080 = vunpack.c.l.b16 %v1007
        %v1081 = vunpack.c.l.b16 %v1008
        %v1082 = vunpack.c.l.b16 %v1009
        %v1083 = vunpack.c.l.b16 %v1010
        %v1084 = vunpack.c.l.b16 %v1011
        %v1085 = vpack.c.b16 %v1054, %v1053
        %v1086 = vpack.c.b16 %v1056, %v1055
        %v1087 = vpack.c.b16 %v1058, %v1057
        %v1088 = vpack.c.b16 %v1060, %v1059
        %v1089 = vpack.c.b16 %v1062, %v1061
        %v1090 = vpack.c.b16 %v1064, %v1063
        %v1091 = vpack.c.b16 %v1066, %v1065
        %v1092 = vpack.c.b16 %v1068, %v1067
        %v1093 = vpack.c.b16 %v1070, %v1069
        %v1094 = vpack.c.b16 %v1072, %v1071
        %v1095 = vpack.c.b16 %v1074, %v1073
        %v1096 = vpack.c.b16 %v1076, %v1075
        %v1097 = vpack.c.b16 %v1078, %v1077
        %v1098 = vpack.c.b16 %v1080, %v1079
        %v1099 = vpack.c.b16 %v1082, %v1081
        %v1100 = vpack.c.b16 %v1084, %v1083
        %v1119 = vunpack.c.l.b16 %v1012
        %v1120 = vunpack.c.l.b16 %v1013
        %v1121 = vpack.c.b16 %v1120, %v1119
        %1123 = vmatprep.subr.bf16.mxu0 0
        %1124 = vmatpush1.bf16.xpose.msra.mxu0 %v1121
        %1125 = vmatprep.subr.bf16.mxu0 0
        %1126 = vmatpush1.bf16.xpose.msra.mxu0 0
        %1127 = vmatprep.subr.bf16.mxu0 0
        %1128 = vmatpush1.bf16.xpose.msra.mxu0 0
        %1129 = vmatprep.subr.bf16.mxu0 0
        %1130 = vmatpush1.bf16.xpose.msra.mxu0 0
        %1131 = vmatprep.subr.bf16.mxu0 0
        %1132 = vmatpush1.bf16.xpose.msra.mxu0 0
        %1133 = vmatprep.subr.bf16.mxu0 0
        %1134 = vmatpush1.bf16.xpose.msra.mxu0 0
        %1135 = vmatprep.subr.bf16.mxu0 0
        %1136 = vmatpush1.bf16.xpose.msra.mxu0 0
        %1137 = vmatprep.subr.bf16.mxu0 0
        %1138 = vmatpush1.bf16.xpose.msra.mxu0 0
        %1139 = vmatprep.subr.bf16.mxu0 0
        %1140 = vmatpush1.bf16.xpose.msra.mxu0 0
        %1141 = vmatprep.subr.bf16.mxu0 0
        %1142 = vmatpush1.bf16.xpose.msra.mxu0 0
        %1143 = vmatprep.subr.bf16.mxu0 0
        %1144 = vmatpush1.bf16.xpose.msra.mxu0 0
        %1145 = vmatprep.subr.bf16.mxu0 0
        %1146 = vmatpush1.bf16.xpose.msra.mxu0 0
        %1147 = vmatprep.subr.bf16.mxu0 0
        %1148 = vmatpush1.bf16.xpose.msra.mxu0 0
        %1149 = vmatprep.subr.bf16.mxu0 0
        %1150 = vmatpush1.bf16.xpose.msra.mxu0 0
        %1151 = vmatprep.subr.bf16.mxu0 0
        %1152 = vmatpush1.bf16.xpose.msra.mxu0 0
        %1153 = vmatprep.subr.bf16.mxu0 0
        %1154 = vmatpush1.bf16.xpose.msra.mxu0 0
        %1155 = vmatprep.mubr.bf16.mxu0 0
        %1156 = vmatmul.mubr.bf16.gmra.mrb[0].mxu0 %v1085
        %v1157 = vpop.f32.mrb[0].mxu0
        %v1158 = vadd.f32 %v1019, %v1157
        %v1159 = vpop.f32.mrb[0].mxu0
        %v1160 = vpop.f32.mrb[0].mxu0
        %v1161 = vadd.f32 %v1019, %v1160
        %v1162 = vpop.f32.mrb[0].mxu0
        %1163 = vmatprep.mubr.bf16.mxu0 0
        %1164 = vmatmul.mubr.bf16.gmra.mrb[0].mxu0 %v1086
        %v1165 = vpop.f32.mrb[0].mxu0
        %v1166 = vadd.f32 %v1019, %v1165
        %v1167 = vpop.f32.mrb[0].mxu0
        %v1168 = vpop.f32.mrb[0].mxu0
        %v1169 = vadd.f32 %v1019, %v1168
        %v1170 = vpop.f32.mrb[0].mxu0
        %1171 = vmatprep.mubr.bf16.mxu0 0
        %1172 = vmatmul.mubr.bf16.gmra.mrb[0].mxu0 %v1087
        %v1173 = vpop.f32.mrb[0].mxu0
        %v1174 = vadd.f32 %v1019, %v1173
        %v1175 = vpop.f32.mrb[0].mxu0
        %v1176 = vpop.f32.mrb[0].mxu0
        %v1177 = vadd.f32 %v1019, %v1176
        %v1178 = vpop.f32.mrb[0].mxu0
        %1179 = vmatprep.mubr.bf16.mxu0 0
        %1180 = vmatmul.mubr.bf16.gmra.mrb[0].mxu0 %v1088
        %v1181 = vpop.f32.mrb[0].mxu0
        %v1182 = vadd.f32 %v1019, %v1181
        %v1183 = vpop.f32.mrb[0].mxu0
        %v1184 = vpop.f32.mrb[0].mxu0
        %v1185 = vadd.f32 %v1019, %v1184
        %v1186 = vpop.f32.mrb[0].mxu0
        %1187 = vmatprep.mubr.bf16.mxu0 0
        %1188 = vmatmul.mubr.bf16.gmra.mrb[0].mxu0 %v1089
        %v1189 = vpop.f32.mrb[0].mxu0
        %v1190 = vadd.f32 %v1019, %v1189
        %v1191 = vpop.f32.mrb[0].mxu0
        %v1192 = vpop.f32.mrb[0].mxu0
        %v1193 = vadd.f32 %v1019, %v1192
        %v1194 = vpop.f32.mrb[0].mxu0
        %1195 = vmatprep.mubr.bf16.mxu0 0
        %1196 = vmatmul.mubr.bf16.gmra.mrb[0].mxu0 %v1090
        %v1197 = vpop.f32.mrb[0].mxu0
        %v1198 = vadd.f32 %v1019, %v1197
        %v1199 = vpop.f32.mrb[0].mxu0
        %v1200 = vpop.f32.mrb[0].mxu0
        %v1201 = vadd.f32 %v1019, %v1200
        %v1202 = vpop.f32.mrb[0].mxu0
        %1203 = vmatprep.mubr.bf16.mxu0 0
        %1204 = vmatmul.mubr.bf16.gmra.mrb[0].mxu0 %v1091
        %v1205 = vpop.f32.mrb[0].mxu0
        %v1206 = vadd.f32 %v1019, %v1205
        %v1207 = vpop.f32.mrb[0].mxu0
        %v1208 = vpop.f32.mrb[0].mxu0
        %v1209 = vadd.f32 %v1019, %v1208
        %v1210 = vpop.f32.mrb[0].mxu0
        %1211 = vmatprep.mubr.bf16.mxu0 0
        %1212 = vmatmul.mubr.bf16.gmra.mrb[0].mxu0 %v1092
        %v1213 = vpop.f32.mrb[0].mxu0
        %v1214 = vadd.f32 %v1019, %v1213
        %v1215 = vpop.f32.mrb[0].mxu0
        %v1216 = vpop.f32.mrb[0].mxu0
        %v1217 = vadd.f32 %v1019, %v1216
        %v1218 = vpop.f32.mrb[0].mxu0
        %1219 = vmatprep.mubr.bf16.mxu0 0
        %1220 = vmatmul.mubr.bf16.gmra.mrb[0].mxu0 %v1093
        %v1221 = vpop.f32.mrb[0].mxu0
        %v1222 = vadd.f32 %v1019, %v1221
        %v1223 = vpop.f32.mrb[0].mxu0
        %v1224 = vpop.f32.mrb[0].mxu0
        %v1225 = vadd.f32 %v1019, %v1224
        %v1226 = vpop.f32.mrb[0].mxu0
        %1227 = vmatprep.mubr.bf16.mxu0 0
        %1228 = vmatmul.mubr.bf16.gmra.mrb[0].mxu0 %v1094
        %v1229 = vpop.f32.mrb[0].mxu0
        %v1230 = vadd.f32 %v1019, %v1229
        %v1231 = vpop.f32.mrb[0].mxu0
        %v1232 = vpop.f32.mrb[0].mxu0
        %v1233 = vadd.f32 %v1019, %v1232
        %v1234 = vpop.f32.mrb[0].mxu0
        %1235 = vmatprep.mubr.bf16.mxu0 0
        %1236 = vmatmul.mubr.bf16.gmra.mrb[0].mxu0 %v1095
        %v1237 = vpop.f32.mrb[0].mxu0
        %v1238 = vadd.f32 %v1019, %v1237
        %v1239 = vpop.f32.mrb[0].mxu0
        %v1240 = vpop.f32.mrb[0].mxu0
        %v1241 = vadd.f32 %v1019, %v1240
        %v1242 = vpop.f32.mrb[0].mxu0
        %1243 = vmatprep.mubr.bf16.mxu0 0
        %1244 = vmatmul.mubr.bf16.gmra.mrb[0].mxu0 %v1096
        %v1245 = vpop.f32.mrb[0].mxu0
        %v1246 = vadd.f32 %v1019, %v1245
        %v1247 = vpop.f32.mrb[0].mxu0
        %v1248 = vpop.f32.mrb[0].mxu0
        %v1249 = vadd.f32 %v1019, %v1248
        %v1250 = vpop.f32.mrb[0].mxu0
        %1251 = vmatprep.mubr.bf16.mxu0 0
        %1252 = vmatmul.mubr.bf16.gmra.mrb[0].mxu0 %v1097
        %v1253 = vpop.f32.mrb[0].mxu0
        %v1254 = vadd.f32 %v1019, %v1253
        %v1255 = vpop.f32.mrb[0].mxu0
        %v1256 = vpop.f32.mrb[0].mxu0
        %v1257 = vadd.f32 %v1019, %v1256
        %v1258 = vpop.f32.mrb[0].mxu0
        %1259 = vmatprep.mubr.bf16.mxu0 0
        %1260 = vmatmul.mubr.bf16.gmra.mrb[0].mxu0 %v1098
        %v1261 = vpop.f32.mrb[0].mxu0
        %v1262 = vadd.f32 %v1019, %v1261
        %v1263 = vpop.f32.mrb[0].mxu0
        %v1264 = vpop.f32.mrb[0].mxu0
        %v1265 = vadd.f32 %v1019, %v1264
        %v1266 = vpop.f32.mrb[0].mxu0
        %1267 = vmatprep.mubr.bf16.mxu0 0
        %1268 = vmatmul.mubr.bf16.gmra.mrb[0].mxu0 %v1099
        %v1269 = vpop.f32.mrb[0].mxu0
        %v1270 = vadd.f32 %v1019, %v1269
        %v1271 = vpop.f32.mrb[0].mxu0
        %v1272 = vpop.f32.mrb[0].mxu0
        %v1273 = vadd.f32 %v1019, %v1272
        %v1274 = vpop.f32.mrb[0].mxu0
        %1275 = vmatprep.mubr.bf16.mxu0 0
        %1276 = vmatmul.mubr.bf16.gmra.mrb[0].mxu0 %v1100
        %v1277 = vpop.f32.mrb[0].mxu0
        %v1278 = vadd.f32 %v1019, %v1277
        %v1279 = vpop.f32.mrb[0].mxu0
        %v1280 = vpop.f32.mrb[0].mxu0
        %v1281 = vadd.f32 %v1019, %v1280
        %v1282 = vpop.f32.mrb[0].mxu0
        %1283 = vdwg.mxu0
        %v1284 = vpack.c.bf16 %v1161, %v1158
        %v1285 = vpack.c.bf16 %v1169, %v1166
        %v1286 = vpack.c.bf16 %v1177, %v1174
        %v1287 = vpack.c.bf16 %v1185, %v1182
        %v1288 = vpack.c.bf16 %v1193, %v1190
        %v1289 = vpack.c.bf16 %v1201, %v1198
        %v1290 = vpack.c.bf16 %v1209, %v1206
        %v1291 = vpack.c.bf16 %v1217, %v1214
        %v1292 = vpack.c.bf16 %v1225, %v1222
        %v1293 = vpack.c.bf16 %v1233, %v1230
        %v1294 = vpack.c.bf16 %v1241, %v1238
        %v1295 = vpack.c.bf16 %v1249, %v1246
        %v1296 = vpack.c.bf16 %v1257, %v1254
        %v1297 = vpack.c.bf16 %v1265, %v1262
        %v1298 = vpack.c.bf16 %v1273, %v1270
        %v1299 = vpack.c.bf16 %v1281, %v1278
        %v1300 = vld [vmem:[#allocation2] sm:$0xff]
        %v1301 = vld [vmem:[#allocation2 + $0x8] sm:$0xff]
        %v1302 = vld [vmem:[#allocation2 + $0x10] sm:$0xff]
        %v1303 = vld [vmem:[#allocation2 + $0x18] sm:$0xff]
        %v1304 = vld [vmem:[#allocation2 + $0x20] sm:$0xff]
        %v1305 = vld [vmem:[#allocation2 + $0x28] sm:$0xff]
        %v1306 = vld [vmem:[#allocation2 + $0x30] sm:$0xff]
        %v1307 = vld [vmem:[#allocation2 + $0x38] sm:$0xff]
        %v1308 = vld [vmem:[#allocation2 + $0x40] sm:$0xff]
        %v1309 = vld [vmem:[#allocation2 + $0x48] sm:$0xff]
        %v1310 = vld [vmem:[#allocation2 + $0x50] sm:$0xff]
        %v1311 = vld [vmem:[#allocation2 + $0x58] sm:$0xff]
        %v1312 = vld [vmem:[#allocation2 + $0x60] sm:$0xff]
        %v1313 = vld [vmem:[#allocation2 + $0x68] sm:$0xff]
        %v1314 = vld [vmem:[#allocation2 + $0x70] sm:$0xff]
        %v1315 = vld [vmem:[#allocation2 + $0x78] sm:$0xff]
        %vm1316 = vcmask 130048
        %v1318 = vsel %vm1316, %v1284, 0
        %v1321 = vsel %vm1316, %v1285, 0
        %v1324 = vsel %vm1316, %v1286, 0
        %v1327 = vsel %vm1316, %v1287, 0
        %v1330 = vsel %vm1316, %v1288, 0
        %v1333 = vsel %vm1316, %v1289, 0
        %v1336 = vsel %vm1316, %v1290, 0
        %v1339 = vsel %vm1316, %v1291, 0
        %v1342 = vsel %vm1316, %v1292, 0
        %v1345 = vsel %vm1316, %v1293, 0
        %v1348 = vsel %vm1316, %v1294, 0
        %v1351 = vsel %vm1316, %v1295, 0
        %v1354 = vsel %vm1316, %v1296, 0
        %v1357 = vsel %vm1316, %v1297, 0
        %v1360 = vsel %vm1316, %v1298, 0
        %v1363 = vsel %vm1316, %v1299, 0
        %v1366 = vsel %vm1316, %v1300, 0
        %v1369 = vsel %vm1316, %v1301, 0
        %v1372 = vsel %vm1316, %v1302, 0
        %v1375 = vsel %vm1316, %v1303, 0
        %v1378 = vsel %vm1316, %v1304, 0
        %v1381 = vsel %vm1316, %v1305, 0
        %v1384 = vsel %vm1316, %v1306, 0
        %v1387 = vsel %vm1316, %v1307, 0
        %v1390 = vsel %vm1316, %v1308, 0
        %v1393 = vsel %vm1316, %v1309, 0
        %v1396 = vsel %vm1316, %v1310, 0
        %v1399 = vsel %vm1316, %v1311, 0
        %v1402 = vsel %vm1316, %v1312, 0
        %v1405 = vsel %vm1316, %v1313, 0
        %v1408 = vsel %vm1316, %v1314, 0
        %v1411 = vsel %vm1316, %v1315, 0
        %1413 = vmatprep.subr.bf16.mxu0 0
        %1414 = vmatpush1.bf16.xpose.msra.mxu0 %v1366
        %1415 = vmatprep.subr.bf16.mxu0 0
        %1416 = vmatpush1.bf16.xpose.msra.mxu0 %v1369
        %1417 = vmatprep.subr.bf16.mxu0 0
        %1418 = vmatpush1.bf16.xpose.msra.mxu0 %v1372
        %1419 = vmatprep.subr.bf16.mxu0 0
        %1420 = vmatpush1.bf16.xpose.msra.mxu0 %v1375
        %1421 = vmatprep.subr.bf16.mxu0 0
        %1422 = vmatpush1.bf16.xpose.msra.mxu0 %v1378
        %1423 = vmatprep.subr.bf16.mxu0 0
        %1424 = vmatpush1.bf16.xpose.msra.mxu0 %v1381
        %1425 = vmatprep.subr.bf16.mxu0 0
        %1426 = vmatpush1.bf16.xpose.msra.mxu0 %v1384
        %1427 = vmatprep.subr.bf16.mxu0 0
        %1428 = vmatpush1.bf16.xpose.msra.mxu0 %v1387
        %1429 = vmatprep.subr.bf16.mxu0 0
        %1430 = vmatpush1.bf16.xpose.msra.mxu0 %v1390
        %1431 = vmatprep.subr.bf16.mxu0 0
        %1432 = vmatpush1.bf16.xpose.msra.mxu0 %v1393
        %1433 = vmatprep.subr.bf16.mxu0 0
        %1434 = vmatpush1.bf16.xpose.msra.mxu0 %v1396
        %1435 = vmatprep.subr.bf16.mxu0 0
        %1436 = vmatpush1.bf16.xpose.msra.mxu0 %v1399
        %1437 = vmatprep.subr.bf16.mxu0 0
        %1438 = vmatpush1.bf16.xpose.msra.mxu0 %v1402
        %1439 = vmatprep.subr.bf16.mxu0 0
        %1440 = vmatpush1.bf16.xpose.msra.mxu0 %v1405
        %1441 = vmatprep.subr.bf16.mxu0 0
        %1442 = vmatpush1.bf16.xpose.msra.mxu0 %v1408
        %1443 = vmatprep.subr.bf16.mxu0 0
        %1444 = vmatpush1.bf16.xpose.msra.mxu0 %v1411
        %1445 = vmatprep.mubr.bf16.mxu0 0
        %1446 = vmatmul.mubr.bf16.gmra.mrb[0].mxu0 %v1318
        %v1447 = vpop.f32.mrb[0].mxu0
        %v1448 = vadd.f32 0.0, %v1447
        %v1449 = vpop.f32.mrb[0].mxu0
        %v1450 = vadd.f32 0.0, %v1449
        %v1451 = vpop.f32.mrb[0].mxu0
        %v1452 = vadd.f32 0.0, %v1451
        %v1453 = vpop.f32.mrb[0].mxu0
        %v1454 = vadd.f32 0.0, %v1453
        %1455 = vmatprep.mubr.bf16.mxu0 0
        %1456 = vmatmul.mubr.bf16.gmra.mrb[0].mxu0 %v1321
        %v1457 = vpop.f32.mrb[0].mxu0
        %v1458 = vadd.f32 0.0, %v1457
        %v1459 = vpop.f32.mrb[0].mxu0
        %v1460 = vadd.f32 0.0, %v1459
        %v1461 = vpop.f32.mrb[0].mxu0
        %v1462 = vadd.f32 0.0, %v1461
        %v1463 = vpop.f32.mrb[0].mxu0
        %v1464 = vadd.f32 0.0, %v1463
        %1465 = vmatprep.mubr.bf16.mxu0 0
        %1466 = vmatmul.mubr.bf16.gmra.mrb[0].mxu0 %v1324
        %v1467 = vpop.f32.mrb[0].mxu0
        %v1468 = vadd.f32 0.0, %v1467
        %v1469 = vpop.f32.mrb[0].mxu0
        %v1470 = vadd.f32 0.0, %v1469
        %v1471 = vpop.f32.mrb[0].mxu0
        %v1472 = vadd.f32 0.0, %v1471
        %v1473 = vpop.f32.mrb[0].mxu0
        %v1474 = vadd.f32 0.0, %v1473
        %1475 = vmatprep.mubr.bf16.mxu0 0
        %1476 = vmatmul.mubr.bf16.gmra.mrb[0].mxu0 %v1327
        %v1477 = vpop.f32.mrb[0].mxu0
        %v1478 = vadd.f32 0.0, %v1477
        %v1479 = vpop.f32.mrb[0].mxu0
        %v1480 = vadd.f32 0.0, %v1479
        %v1481 = vpop.f32.mrb[0].mxu0
        %v1482 = vadd.f32 0.0, %v1481
        %v1483 = vpop.f32.mrb[0].mxu0
        %v1484 = vadd.f32 0.0, %v1483
        %1485 = vmatprep.mubr.bf16.mxu0 0
        %1486 = vmatmul.mubr.bf16.gmra.mrb[0].mxu0 %v1330
        %v1487 = vpop.f32.mrb[0].mxu0
        %v1488 = vadd.f32 0.0, %v1487
        %v1489 = vpop.f32.mrb[0].mxu0
        %v1490 = vadd.f32 0.0, %v1489
        %v1491 = vpop.f32.mrb[0].mxu0
        %v1492 = vadd.f32 0.0, %v1491
        %v1493 = vpop.f32.mrb[0].mxu0
        %v1494 = vadd.f32 0.0, %v1493
        %1495 = vmatprep.mubr.bf16.mxu0 0
        %1496 = vmatmul.mubr.bf16.gmra.mrb[0].mxu0 %v1333
        %v1497 = vpop.f32.mrb[0].mxu0
        %v1498 = vadd.f32 0.0, %v1497
        %v1499 = vpop.f32.mrb[0].mxu0
        %v1500 = vadd.f32 0.0, %v1499
        %v1501 = vpop.f32.mrb[0].mxu0
        %v1502 = vadd.f32 0.0, %v1501
        %v1503 = vpop.f32.mrb[0].mxu0
        %v1504 = vadd.f32 0.0, %v1503
        %1505 = vmatprep.mubr.bf16.mxu0 0
        %1506 = vmatmul.mubr.bf16.gmra.mrb[0].mxu0 %v1336
        %v1507 = vpop.f32.mrb[0].mxu0
        %v1508 = vadd.f32 0.0, %v1507
        %v1509 = vpop.f32.mrb[0].mxu0
        %v1510 = vadd.f32 0.0, %v1509
        %v1511 = vpop.f32.mrb[0].mxu0
        %v1512 = vadd.f32 0.0, %v1511
        %v1513 = vpop.f32.mrb[0].mxu0
        %v1514 = vadd.f32 0.0, %v1513
        %1515 = vmatprep.mubr.bf16.mxu0 0
        %1516 = vmatmul.mubr.bf16.gmra.mrb[0].mxu0 %v1339
        %v1517 = vpop.f32.mrb[0].mxu0
        %v1518 = vadd.f32 0.0, %v1517
        %v1519 = vpop.f32.mrb[0].mxu0
        %v1520 = vadd.f32 0.0, %v1519
        %v1521 = vpop.f32.mrb[0].mxu0
        %v1522 = vadd.f32 0.0, %v1521
        %v1523 = vpop.f32.mrb[0].mxu0
        %v1524 = vadd.f32 0.0, %v1523
        %1525 = vmatprep.mubr.bf16.mxu0 0
        %1526 = vmatmul.mubr.bf16.gmra.mrb[0].mxu0 %v1342
        %v1527 = vpop.f32.mrb[0].mxu0
        %v1528 = vadd.f32 0.0, %v1527
        %v1529 = vpop.f32.mrb[0].mxu0
        %v1530 = vadd.f32 0.0, %v1529
        %v1531 = vpop.f32.mrb[0].mxu0
        %v1532 = vadd.f32 0.0, %v1531
        %v1533 = vpop.f32.mrb[0].mxu0
        %v1534 = vadd.f32 0.0, %v1533
        %1535 = vmatprep.mubr.bf16.mxu0 0
        %1536 = vmatmul.mubr.bf16.gmra.mrb[0].mxu0 %v1345
        %v1537 = vpop.f32.mrb[0].mxu0
        %v1538 = vadd.f32 0.0, %v1537
        %v1539 = vpop.f32.mrb[0].mxu0
        %v1540 = vadd.f32 0.0, %v1539
        %v1541 = vpop.f32.mrb[0].mxu0
        %v1542 = vadd.f32 0.0, %v1541
        %v1543 = vpop.f32.mrb[0].mxu0
        %v1544 = vadd.f32 0.0, %v1543
        %1545 = vmatprep.mubr.bf16.mxu0 0
        %1546 = vmatmul.mubr.bf16.gmra.mrb[0].mxu0 %v1348
        %v1547 = vpop.f32.mrb[0].mxu0
        %v1548 = vadd.f32 0.0, %v1547
        %v1549 = vpop.f32.mrb[0].mxu0
        %v1550 = vadd.f32 0.0, %v1549
        %v1551 = vpop.f32.mrb[0].mxu0
        %v1552 = vadd.f32 0.0, %v1551
        %v1553 = vpop.f32.mrb[0].mxu0
        %v1554 = vadd.f32 0.0, %v1553
        %1555 = vmatprep.mubr.bf16.mxu0 0
        %1556 = vmatmul.mubr.bf16.gmra.mrb[0].mxu0 %v1351
        %v1557 = vpop.f32.mrb[0].mxu0
        %v1558 = vadd.f32 0.0, %v1557
        %v1559 = vpop.f32.mrb[0].mxu0
        %v1560 = vadd.f32 0.0, %v1559
        %v1561 = vpop.f32.mrb[0].mxu0
        %v1562 = vadd.f32 0.0, %v1561
        %v1563 = vpop.f32.mrb[0].mxu0
        %v1564 = vadd.f32 0.0, %v1563
        %1565 = vmatprep.mubr.bf16.mxu0 0
        %1566 = vmatmul.mubr.bf16.gmra.mrb[0].mxu0 %v1354
        %v1567 = vpop.f32.mrb[0].mxu0
        %v1568 = vadd.f32 0.0, %v1567
        %v1569 = vpop.f32.mrb[0].mxu0
        %v1570 = vadd.f32 0.0, %v1569
        %v1571 = vpop.f32.mrb[0].mxu0
        %v1572 = vadd.f32 0.0, %v1571
        %v1573 = vpop.f32.mrb[0].mxu0
        %v1574 = vadd.f32 0.0, %v1573
        %1575 = vmatprep.mubr.bf16.mxu0 0
        %1576 = vmatmul.mubr.bf16.gmra.mrb[0].mxu0 %v1357
        %v1577 = vpop.f32.mrb[0].mxu0
        %v1578 = vadd.f32 0.0, %v1577
        %v1579 = vpop.f32.mrb[0].mxu0
        %v1580 = vadd.f32 0.0, %v1579
        %v1581 = vpop.f32.mrb[0].mxu0
        %v1582 = vadd.f32 0.0, %v1581
        %v1583 = vpop.f32.mrb[0].mxu0
        %v1584 = vadd.f32 0.0, %v1583
        %1585 = vmatprep.mubr.bf16.mxu0 0
        %1586 = vmatmul.mubr.bf16.gmra.mrb[0].mxu0 %v1360
        %v1587 = vpop.f32.mrb[0].mxu0
        %v1588 = vadd.f32 0.0, %v1587
        %v1589 = vpop.f32.mrb[0].mxu0
        %v1590 = vadd.f32 0.0, %v1589
        %v1591 = vpop.f32.mrb[0].mxu0
        %v1592 = vadd.f32 0.0, %v1591
        %v1593 = vpop.f32.mrb[0].mxu0
        %v1594 = vadd.f32 0.0, %v1593
        %1595 = vmatprep.mubr.bf16.mxu0 0
        %1596 = vmatmul.mubr.bf16.gmra.mrb[0].mxu0 %v1363
        %v1597 = vpop.f32.mrb[0].mxu0
        %v1598 = vadd.f32 0.0, %v1597
        %v1599 = vpop.f32.mrb[0].mxu0
        %v1600 = vadd.f32 0.0, %v1599
        %v1601 = vpop.f32.mrb[0].mxu0
        %v1602 = vadd.f32 0.0, %v1601
        %v1603 = vpop.f32.mrb[0].mxu0
        %v1604 = vadd.f32 0.0, %v1603
        %1605 = vdwg.mxu0
        %v1606 = vmax.f32 %v1448, %v1450
        %1607 = vmax.xlane.f32.xlu0 %v1606
        %v1608 = vpop.xlane.xlu0 %1607
        %v1609 = vmax.f32 %v1452, %v1454
        %1610 = vmax.xlane.f32.xlu0 %v1609
        %v1611 = vpop.xlane.xlu0 %1610
        %v1612 = vmax.f32 %v1458, %v1460
        %1613 = vmax.xlane.f32.xlu0 %v1612
        %v1614 = vpop.xlane.xlu0 %1613
        %v1615 = vmax.f32 %v1462, %v1464
        %1616 = vmax.xlane.f32.xlu0 %v1615
        %v1617 = vpop.xlane.xlu0 %1616
        %v1618 = vmax.f32 %v1468, %v1470
        %1619 = vmax.xlane.f32.xlu0 %v1618
        %v1620 = vpop.xlane.xlu0 %1619
        %v1621 = vmax.f32 %v1472, %v1474
        %1622 = vmax.xlane.f32.xlu0 %v1621
        %v1623 = vpop.xlane.xlu0 %1622
        %v1624 = vmax.f32 %v1478, %v1480
        %1625 = vmax.xlane.f32.xlu0 %v1624
        %v1626 = vpop.xlane.xlu0 %1625
        %v1627 = vmax.f32 %v1482, %v1484
        %1628 = vmax.xlane.f32.xlu0 %v1627
        %v1629 = vpop.xlane.xlu0 %1628
        %v1630 = vmax.f32 %v1488, %v1490
        %1631 = vmax.xlane.f32.xlu0 %v1630
        %v1632 = vpop.xlane.xlu0 %1631
        %v1633 = vmax.f32 %v1492, %v1494
        %1634 = vmax.xlane.f32.xlu0 %v1633
        %v1635 = vpop.xlane.xlu0 %1634
        %v1636 = vmax.f32 %v1498, %v1500
        %1637 = vmax.xlane.f32.xlu0 %v1636
        %v1638 = vpop.xlane.xlu0 %1637
        %v1639 = vmax.f32 %v1502, %v1504
        %1640 = vmax.xlane.f32.xlu0 %v1639
        %v1641 = vpop.xlane.xlu0 %1640
        %v1642 = vmax.f32 %v1508, %v1510
        %1643 = vmax.xlane.f32.xlu0 %v1642
        %v1644 = vpop.xlane.xlu0 %1643
        %v1645 = vmax.f32 %v1512, %v1514
        %1646 = vmax.xlane.f32.xlu0 %v1645
        %v1647 = vpop.xlane.xlu0 %1646
        %v1648 = vmax.f32 %v1518, %v1520
        %1649 = vmax.xlane.f32.xlu0 %v1648
        %v1650 = vpop.xlane.xlu0 %1649
        %v1651 = vmax.f32 %v1522, %v1524
        %1652 = vmax.xlane.f32.xlu0 %v1651
        %v1653 = vpop.xlane.xlu0 %1652
        %v1654 = vmax.f32 %v1528, %v1530
        %1655 = vmax.xlane.f32.xlu0 %v1654
        %v1656 = vpop.xlane.xlu0 %1655
        %v1657 = vmax.f32 %v1532, %v1534
        %1658 = vmax.xlane.f32.xlu0 %v1657
        %v1659 = vpop.xlane.xlu0 %1658
        %v1660 = vmax.f32 %v1538, %v1540
        %1661 = vmax.xlane.f32.xlu0 %v1660
        %v1662 = vpop.xlane.xlu0 %1661
        %v1663 = vmax.f32 %v1542, %v1544
        %1664 = vmax.xlane.f32.xlu0 %v1663
        %v1665 = vpop.xlane.xlu0 %1664
        %v1666 = vmax.f32 %v1548, %v1550
        %1667 = vmax.xlane.f32.xlu0 %v1666
        %v1668 = vpop.xlane.xlu0 %1667
        %v1669 = vmax.f32 %v1552, %v1554
        %1670 = vmax.xlane.f32.xlu0 %v1669
        %v1671 = vpop.xlane.xlu0 %1670
        %v1672 = vmax.f32 %v1558, %v1560
        %1673 = vmax.xlane.f32.xlu0 %v1672
        %v1674 = vpop.xlane.xlu0 %1673
        %v1675 = vmax.f32 %v1562, %v1564
        %1676 = vmax.xlane.f32.xlu0 %v1675
        %v1677 = vpop.xlane.xlu0 %1676
        %v1678 = vmax.f32 %v1568, %v1570
        %1679 = vmax.xlane.f32.xlu0 %v1678
        %v1680 = vpop.xlane.xlu0 %1679
        %v1681 = vmax.f32 %v1572, %v1574
        %1682 = vmax.xlane.f32.xlu0 %v1681
        %v1683 = vpop.xlane.xlu0 %1682
        %v1684 = vmax.f32 %v1578, %v1580
        %1685 = vmax.xlane.f32.xlu0 %v1684
        %v1686 = vpop.xlane.xlu0 %1685
        %v1687 = vmax.f32 %v1582, %v1584
        %1688 = vmax.xlane.f32.xlu0 %v1687
        %v1689 = vpop.xlane.xlu0 %1688
        %v1690 = vmax.f32 %v1588, %v1590
        %1691 = vmax.xlane.f32.xlu0 %v1690
        %v1692 = vpop.xlane.xlu0 %1691
        %v1693 = vmax.f32 %v1592, %v1594
        %1694 = vmax.xlane.f32.xlu0 %v1693
        %v1695 = vpop.xlane.xlu0 %1694
        %v1696 = vmax.f32 %v1598, %v1600
        %1697 = vmax.xlane.f32.xlu0 %v1696
        %v1698 = vpop.xlane.xlu0 %1697
        %v1699 = vmax.f32 %v1602, %v1604
        %1700 = vmax.xlane.f32.xlu0 %v1699
        %v1701 = vpop.xlane.xlu0 %1700
        %v1702 = vsub.f32 %v1448, %v1608
        %v1703 = vsub.f32 %v1450, %v1608
        %v1704 = vsub.f32 %v1452, %v1611
        %v1705 = vsub.f32 %v1454, %v1611
        %v1706 = vsub.f32 %v1458, %v1614
        %v1707 = vsub.f32 %v1460, %v1614
        %v1708 = vsub.f32 %v1462, %v1617
        %v1709 = vsub.f32 %v1464, %v1617
        %v1710 = vsub.f32 %v1468, %v1620
        %v1711 = vsub.f32 %v1470, %v1620
        %v1712 = vsub.f32 %v1472, %v1623
        %v1713 = vsub.f32 %v1474, %v1623
        %v1714 = vsub.f32 %v1478, %v1626
        %v1715 = vsub.f32 %v1480, %v1626
        %v1716 = vsub.f32 %v1482, %v1629
        %v1717 = vsub.f32 %v1484, %v1629
        %v1718 = vsub.f32 %v1488, %v1632
        %v1719 = vsub.f32 %v1490, %v1632
        %v1720 = vsub.f32 %v1492, %v1635
        %v1721 = vsub.f32 %v1494, %v1635
        %v1722 = vsub.f32 %v1498, %v1638
        %v1723 = vsub.f32 %v1500, %v1638
        %v1724 = vsub.f32 %v1502, %v1641
        %v1725 = vsub.f32 %v1504, %v1641
        %v1726 = vsub.f32 %v1508, %v1644
        %v1727 = vsub.f32 %v1510, %v1644
        %v1728 = vsub.f32 %v1512, %v1647
        %v1729 = vsub.f32 %v1514, %v1647
        %v1730 = vsub.f32 %v1518, %v1650
        %v1731 = vsub.f32 %v1520, %v1650
        %v1732 = vsub.f32 %v1522, %v1653
        %v1733 = vsub.f32 %v1524, %v1653
        %v1734 = vsub.f32 %v1528, %v1656
        %v1735 = vsub.f32 %v1530, %v1656
        %v1736 = vsub.f32 %v1532, %v1659
        %v1737 = vsub.f32 %v1534, %v1659
        %v1738 = vsub.f32 %v1538, %v1662
        %v1739 = vsub.f32 %v1540, %v1662
        %v1740 = vsub.f32 %v1542, %v1665
        %v1741 = vsub.f32 %v1544, %v1665
        %v1742 = vsub.f32 %v1548, %v1668
        %v1743 = vsub.f32 %v1550, %v1668
        %v1744 = vsub.f32 %v1552, %v1671
        %v1745 = vsub.f32 %v1554, %v1671
        %v1746 = vsub.f32 %v1558, %v1674
        %v1747 = vsub.f32 %v1560, %v1674
        %v1748 = vsub.f32 %v1562, %v1677
        %v1749 = vsub.f32 %v1564, %v1677
        %v1750 = vsub.f32 %v1568, %v1680
        %v1751 = vsub.f32 %v1570, %v1680
        %v1752 = vsub.f32 %v1572, %v1683
        %v1753 = vsub.f32 %v1574, %v1683
        %v1754 = vsub.f32 %v1578, %v1686
        %v1755 = vsub.f32 %v1580, %v1686
        %v1756 = vsub.f32 %v1582, %v1689
        %v1757 = vsub.f32 %v1584, %v1689
        %v1758 = vsub.f32 %v1588, %v1692
        %v1759 = vsub.f32 %v1590, %v1692
        %v1760 = vsub.f32 %v1592, %v1695
        %v1761 = vsub.f32 %v1594, %v1695
        %v1762 = vsub.f32 %v1598, %v1698
        %v1763 = vsub.f32 %v1600, %v1698
        %v1764 = vsub.f32 %v1602, %v1701
        %v1765 = vsub.f32 %v1604, %v1701
        %v1766 = vmul.f32 %v1702, 1.442695
        %v1767 = vpow.pop %v1766
        %v1768 = vmul.f32 %v1703, 1.442695
        %v1769 = vpow.pop %v1768
        %v1770 = vmul.f32 %v1704, 1.442695
        %v1771 = vpow.pop %v1770
        %v1772 = vmul.f32 %v1705, 1.442695
        %v1773 = vpow.pop %v1772
        %v1774 = vmul.f32 %v1706, 1.442695
        %v1775 = vpow.pop %v1774
        %v1776 = vmul.f32 %v1707, 1.442695
        %v1777 = vpow.pop %v1776
        %v1778 = vmul.f32 %v1708, 1.442695
        %v1779 = vpow.pop %v1778
        %v1780 = vmul.f32 %v1709, 1.442695
        %v1781 = vpow.pop %v1780
        %v1782 = vmul.f32 %v1710, 1.442695
        %v1783 = vpow.pop %v1782
        %v1784 = vmul.f32 %v1711, 1.442695
        %v1785 = vpow.pop %v1784
        %v1786 = vmul.f32 %v1712, 1.442695
        %v1787 = vpow.pop %v1786
        %v1788 = vmul.f32 %v1713, 1.442695
        %v1789 = vpow.pop %v1788
        %v1790 = vmul.f32 %v1714, 1.442695
        %v1791 = vpow.pop %v1790
        %v1792 = vmul.f32 %v1715, 1.442695
        %v1793 = vpow.pop %v1792
        %v1794 = vmul.f32 %v1716, 1.442695
        %v1795 = vpow.pop %v1794
        %v1796 = vmul.f32 %v1717, 1.442695
        %v1797 = vpow.pop %v1796
        %v1798 = vmul.f32 %v1718, 1.442695
        %v1799 = vpow.pop %v1798
        %v1800 = vmul.f32 %v1719, 1.442695
        %v1801 = vpow.pop %v1800
        %v1802 = vmul.f32 %v1720, 1.442695
        %v1803 = vpow.pop %v1802
        %v1804 = vmul.f32 %v1721, 1.442695
        %v1805 = vpow.pop %v1804
        %v1806 = vmul.f32 %v1722, 1.442695
        %v1807 = vpow.pop %v1806
        %v1808 = vmul.f32 %v1723, 1.442695
        %v1809 = vpow.pop %v1808
        %v1810 = vmul.f32 %v1724, 1.442695
        %v1811 = vpow.pop %v1810
        %v1812 = vmul.f32 %v1725, 1.442695
        %v1813 = vpow.pop %v1812
        %v1814 = vmul.f32 %v1726, 1.442695
        %v1815 = vpow.pop %v1814
        %v1816 = vmul.f32 %v1727, 1.442695
        %v1817 = vpow.pop %v1816
        %v1818 = vmul.f32 %v1728, 1.442695
        %v1819 = vpow.pop %v1818
        %v1820 = vmul.f32 %v1729, 1.442695
        %v1821 = vpow.pop %v1820
        %v1822 = vmul.f32 %v1730, 1.442695
        %v1823 = vpow.pop %v1822
        %v1824 = vmul.f32 %v1731, 1.442695
        %v1825 = vpow.pop %v1824
        %v1826 = vmul.f32 %v1732, 1.442695
        %v1827 = vpow.pop %v1826
        %v1828 = vmul.f32 %v1733, 1.442695
        %v1829 = vpow.pop %v1828
        %v1830 = vmul.f32 %v1734, 1.442695
        %v1831 = vpow.pop %v1830
        %v1832 = vmul.f32 %v1735, 1.442695
        %v1833 = vpow.pop %v1832
        %v1834 = vmul.f32 %v1736, 1.442695
        %v1835 = vpow.pop %v1834
        %v1836 = vmul.f32 %v1737, 1.442695
        %v1837 = vpow.pop %v1836
        %v1838 = vmul.f32 %v1738, 1.442695
        %v1839 = vpow.pop %v1838
        %v1840 = vmul.f32 %v1739, 1.442695
        %v1841 = vpow.pop %v1840
        %v1842 = vmul.f32 %v1740, 1.442695
        %v1843 = vpow.pop %v1842
        %v1844 = vmul.f32 %v1741, 1.442695
        %v1845 = vpow.pop %v1844
        %v1846 = vmul.f32 %v1742, 1.442695
        %v1847 = vpow.pop %v1846
        %v1848 = vmul.f32 %v1743, 1.442695
        %v1849 = vpow.pop %v1848
        %v1850 = vmul.f32 %v1744, 1.442695
        %v1851 = vpow.pop %v1850
        %v1852 = vmul.f32 %v1745, 1.442695
        %v1853 = vpow.pop %v1852
        %v1854 = vmul.f32 %v1746, 1.442695
        %v1855 = vpow.pop %v1854
        %v1856 = vmul.f32 %v1747, 1.442695
        %v1857 = vpow.pop %v1856
        %v1858 = vmul.f32 %v1748, 1.442695
        %v1859 = vpow.pop %v1858
        %v1860 = vmul.f32 %v1749, 1.442695
        %v1861 = vpow.pop %v1860
        %v1862 = vmul.f32 %v1750, 1.442695
        %v1863 = vpow.pop %v1862
        %v1864 = vmul.f32 %v1751, 1.442695
        %v1865 = vpow.pop %v1864
        %v1866 = vmul.f32 %v1752, 1.442695
        %v1867 = vpow.pop %v1866
        %v1868 = vmul.f32 %v1753, 1.442695
        %v1869 = vpow.pop %v1868
        %v1870 = vmul.f32 %v1754, 1.442695
        %v1871 = vpow.pop %v1870
        %v1872 = vmul.f32 %v1755, 1.442695
        %v1873 = vpow.pop %v1872
        %v1874 = vmul.f32 %v1756, 1.442695
        %v1875 = vpow.pop %v1874
        %v1876 = vmul.f32 %v1757, 1.442695
        %v1877 = vpow.pop %v1876
        %v1878 = vmul.f32 %v1758, 1.442695
        %v1879 = vpow.pop %v1878
        %v1880 = vmul.f32 %v1759, 1.442695
        %v1881 = vpow.pop %v1880
        %v1882 = vmul.f32 %v1760, 1.442695
        %v1883 = vpow.pop %v1882
        %v1884 = vmul.f32 %v1761, 1.442695
        %v1885 = vpow.pop %v1884
        %v1886 = vmul.f32 %v1762, 1.442695
        %v1887 = vpow.pop %v1886
        %v1888 = vmul.f32 %v1763, 1.442695
        %v1889 = vpow.pop %v1888
        %v1890 = vmul.f32 %v1764, 1.442695
        %v1891 = vpow.pop %v1890
        %v1892 = vmul.f32 %v1765, 1.442695
        %v1893 = vpow.pop %v1892
        %v1894 = vadd.f32 %v1767, %v1769
        %1895 = vadd.xlane.f32.xlu0 %v1894
        %v1896 = vpop.xlane.xlu0 %1895
        %v1897 = vadd.f32 %v1771, %v1773
        %1898 = vadd.xlane.f32.xlu0 %v1897
        %v1899 = vpop.xlane.xlu0 %1898
        %v1900 = vadd.f32 %v1775, %v1777
        %1901 = vadd.xlane.f32.xlu0 %v1900
        %v1902 = vpop.xlane.xlu0 %1901
        %v1903 = vadd.f32 %v1779, %v1781
        %1904 = vadd.xlane.f32.xlu0 %v1903
        %v1905 = vpop.xlane.xlu0 %1904
        %v1906 = vadd.f32 %v1783, %v1785
        %1907 = vadd.xlane.f32.xlu0 %v1906
        %v1908 = vpop.xlane.xlu0 %1907
        %v1909 = vadd.f32 %v1787, %v1789
        %1910 = vadd.xlane.f32.xlu0 %v1909
        %v1911 = vpop.xlane.xlu0 %1910
        %v1912 = vadd.f32 %v1791, %v1793
        %1913 = vadd.xlane.f32.xlu0 %v1912
        %v1914 = vpop.xlane.xlu0 %1913
        %v1915 = vadd.f32 %v1795, %v1797
        %1916 = vadd.xlane.f32.xlu0 %v1915
        %v1917 = vpop.xlane.xlu0 %1916
        %v1918 = vadd.f32 %v1799, %v1801
        %1919 = vadd.xlane.f32.xlu0 %v1918
        %v1920 = vpop.xlane.xlu0 %1919
        %v1921 = vadd.f32 %v1803, %v1805
        %1922 = vadd.xlane.f32.xlu0 %v1921
        %v1923 = vpop.xlane.xlu0 %1922
        %v1924 = vadd.f32 %v1807, %v1809
        %1925 = vadd.xlane.f32.xlu0 %v1924
        %v1926 = vpop.xlane.xlu0 %1925
        %v1927 = vadd.f32 %v1811, %v1813
        %1928 = vadd.xlane.f32.xlu0 %v1927
        %v1929 = vpop.xlane.xlu0 %1928
        %v1930 = vadd.f32 %v1815, %v1817
        %1931 = vadd.xlane.f32.xlu0 %v1930
        %v1932 = vpop.xlane.xlu0 %1931
        %v1933 = vadd.f32 %v1819, %v1821
        %1934 = vadd.xlane.f32.xlu0 %v1933
        %v1935 = vpop.xlane.xlu0 %1934
        %v1936 = vadd.f32 %v1823, %v1825
        %1937 = vadd.xlane.f32.xlu0 %v1936
        %v1938 = vpop.xlane.xlu0 %1937
        %v1939 = vadd.f32 %v1827, %v1829
        %1940 = vadd.xlane.f32.xlu0 %v1939
        %v1941 = vpop.xlane.xlu0 %1940
        %v1942 = vadd.f32 %v1831, %v1833
        %1943 = vadd.xlane.f32.xlu0 %v1942
        %v1944 = vpop.xlane.xlu0 %1943
        %v1945 = vadd.f32 %v1835, %v1837
        %1946 = vadd.xlane.f32.xlu0 %v1945
        %v1947 = vpop.xlane.xlu0 %1946
        %v1948 = vadd.f32 %v1839, %v1841
        %1949 = vadd.xlane.f32.xlu0 %v1948
        %v1950 = vpop.xlane.xlu0 %1949
        %v1951 = vadd.f32 %v1843, %v1845
        %1952 = vadd.xlane.f32.xlu0 %v1951
        %v1953 = vpop.xlane.xlu0 %1952
        %v1954 = vadd.f32 %v1847, %v1849
        %1955 = vadd.xlane.f32.xlu0 %v1954
        %v1956 = vpop.xlane.xlu0 %1955
        %v1957 = vadd.f32 %v1851, %v1853
        %1958 = vadd.xlane.f32.xlu0 %v1957
        %v1959 = vpop.xlane.xlu0 %1958
        %v1960 = vadd.f32 %v1855, %v1857
        %1961 = vadd.xlane.f32.xlu0 %v1960
        %v1962 = vpop.xlane.xlu0 %1961
        %v1963 = vadd.f32 %v1859, %v1861
        %1964 = vadd.xlane.f32.xlu0 %v1963
        %v1965 = vpop.xlane.xlu0 %1964
        %v1966 = vadd.f32 %v1863, %v1865
        %1967 = vadd.xlane.f32.xlu0 %v1966
        %v1968 = vpop.xlane.xlu0 %1967
        %v1969 = vadd.f32 %v1867, %v1869
        %1970 = vadd.xlane.f32.xlu0 %v1969
        %v1971 = vpop.xlane.xlu0 %1970
        %v1972 = vadd.f32 %v1871, %v1873
        %1973 = vadd.xlane.f32.xlu0 %v1972
        %v1974 = vpop.xlane.xlu0 %1973
        %v1975 = vadd.f32 %v1875, %v1877
        %1976 = vadd.xlane.f32.xlu0 %v1975
        %v1977 = vpop.xlane.xlu0 %1976
        %v1978 = vadd.f32 %v1879, %v1881
        %1979 = vadd.xlane.f32.xlu0 %v1978
        %v1980 = vpop.xlane.xlu0 %1979
        %v1981 = vadd.f32 %v1883, %v1885
        %1982 = vadd.xlane.f32.xlu0 %v1981
        %v1983 = vpop.xlane.xlu0 %1982
        %v1984 = vadd.f32 %v1887, %v1889
        %1985 = vadd.xlane.f32.xlu0 %v1984
        %v1986 = vpop.xlane.xlu0 %1985
        %v1987 = vadd.f32 %v1891, %v1893
        %1988 = vadd.xlane.f32.xlu0 %v1987
        %v1989 = vpop.xlane.xlu0 %1988
        %v1990 = vrcp.pop %v1896
        %v1991 = vrcp.pop %v1899
        %v1992 = vrcp.pop %v1902
        %v1993 = vrcp.pop %v1905
        %v1994 = vrcp.pop %v1908
        %v1995 = vrcp.pop %v1911
        %v1996 = vrcp.pop %v1914
        %v1997 = vrcp.pop %v1917
        %v1998 = vrcp.pop %v1920
        %v1999 = vrcp.pop %v1923
        %v2000 = vrcp.pop %v1926
        %v2001 = vrcp.pop %v1929
        %v2002 = vrcp.pop %v1932
        %v2003 = vrcp.pop %v1935
        %v2004 = vrcp.pop %v1938
        %v2005 = vrcp.pop %v1941
        %v2006 = vrcp.pop %v1944
        %v2007 = vrcp.pop %v1947
        %v2008 = vrcp.pop %v1950
        %v2009 = vrcp.pop %v1953
        %v2010 = vrcp.pop %v1956
        %v2011 = vrcp.pop %v1959
        %v2012 = vrcp.pop %v1962
        %v2013 = vrcp.pop %v1965
        %v2014 = vrcp.pop %v1968
        %v2015 = vrcp.pop %v1971
        %v2016 = vrcp.pop %v1974
        %v2017 = vrcp.pop %v1977
        %v2018 = vrcp.pop %v1980
        %v2019 = vrcp.pop %v1983
        %v2020 = vrcp.pop %v1986
        %v2021 = vrcp.pop %v1989
        %v2022 = vmul.f32 %v1767, %v1990
        %v2023 = vmul.f32 %v1769, %v1990
        %v2024 = vmul.f32 %v1771, %v1991
        %v2025 = vmul.f32 %v1773, %v1991
        %v2026 = vmul.f32 %v1775, %v1992
        %v2027 = vmul.f32 %v1777, %v1992
        %v2028 = vmul.f32 %v1779, %v1993
        %v2029 = vmul.f32 %v1781, %v1993
        %v2030 = vmul.f32 %v1783, %v1994
        %v2031 = vmul.f32 %v1785, %v1994
        %v2032 = vmul.f32 %v1787, %v1995
        %v2033 = vmul.f32 %v1789, %v1995
        %v2034 = vmul.f32 %v1791, %v1996
        %v2035 = vmul.f32 %v1793, %v1996
        %v2036 = vmul.f32 %v1795, %v1997
        %v2037 = vmul.f32 %v1797, %v1997
        %v2038 = vmul.f32 %v1799, %v1998
        %v2039 = vmul.f32 %v1801, %v1998
        %v2040 = vmul.f32 %v1803, %v1999
        %v2041 = vmul.f32 %v1805, %v1999
        %v2042 = vmul.f32 %v1807, %v2000
        %v2043 = vmul.f32 %v1809, %v2000
        %v2044 = vmul.f32 %v1811, %v2001
        %v2045 = vmul.f32 %v1813, %v2001
        %v2046 = vmul.f32 %v1815, %v2002
        %v2047 = vmul.f32 %v1817, %v2002
        %v2048 = vmul.f32 %v1819, %v2003
        %v2049 = vmul.f32 %v1821, %v2003
        %v2050 = vmul.f32 %v1823, %v2004
        %v2051 = vmul.f32 %v1825, %v2004
        %v2052 = vmul.f32 %v1827, %v2005
        %v2053 = vmul.f32 %v1829, %v2005
        %v2054 = vmul.f32 %v1831, %v2006
        %v2055 = vmul.f32 %v1833, %v2006
        %v2056 = vmul.f32 %v1835, %v2007
        %v2057 = vmul.f32 %v1837, %v2007
        %v2058 = vmul.f32 %v1839, %v2008
        %v2059 = vmul.f32 %v1841, %v2008
        %v2060 = vmul.f32 %v1843, %v2009
        %v2061 = vmul.f32 %v1845, %v2009
        %v2062 = vmul.f32 %v1847, %v2010
        %v2063 = vmul.f32 %v1849, %v2010
        %v2064 = vmul.f32 %v1851, %v2011
        %v2065 = vmul.f32 %v1853, %v2011
        %v2066 = vmul.f32 %v1855, %v2012
        %v2067 = vmul.f32 %v1857, %v2012
        %v2068 = vmul.f32 %v1859, %v2013
        %v2069 = vmul.f32 %v1861, %v2013
        %v2070 = vmul.f32 %v1863, %v2014
        %v2071 = vmul.f32 %v1865, %v2014
        %v2072 = vmul.f32 %v1867, %v2015
        %v2073 = vmul.f32 %v1869, %v2015
        %v2074 = vmul.f32 %v1871, %v2016
        %v2075 = vmul.f32 %v1873, %v2016
        %v2076 = vmul.f32 %v1875, %v2017
        %v2077 = vmul.f32 %v1877, %v2017
        %v2078 = vmul.f32 %v1879, %v2018
        %v2079 = vmul.f32 %v1881, %v2018
        %v2080 = vmul.f32 %v1883, %v2019
        %v2081 = vmul.f32 %v1885, %v2019
        %v2082 = vmul.f32 %v1887, %v2020
        %v2083 = vmul.f32 %v1889, %v2020
        %v2084 = vmul.f32 %v1891, %v2021
        %v2085 = vmul.f32 %v1893, %v2021
        %v2086 = vpack.c.bf16 %v2024, %v2022
        %v2087 = vpack.c.bf16 %v2025, %v2023
        %v2088 = vpack.c.bf16 %v2028, %v2026
        %v2089 = vpack.c.bf16 %v2029, %v2027
        %v2090 = vpack.c.bf16 %v2032, %v2030
        %v2091 = vpack.c.bf16 %v2033, %v2031
        %v2092 = vpack.c.bf16 %v2036, %v2034
        %v2093 = vpack.c.bf16 %v2037, %v2035
        %v2094 = vpack.c.bf16 %v2040, %v2038
        %v2095 = vpack.c.bf16 %v2041, %v2039
        %v2096 = vpack.c.bf16 %v2044, %v2042
        %v2097 = vpack.c.bf16 %v2045, %v2043
        %v2098 = vpack.c.bf16 %v2048, %v2046
        %v2099 = vpack.c.bf16 %v2049, %v2047
        %v2100 = vpack.c.bf16 %v2052, %v2050
        %v2101 = vpack.c.bf16 %v2053, %v2051
        %v2102 = vpack.c.bf16 %v2056, %v2054
        %v2103 = vpack.c.bf16 %v2057, %v2055
        %v2104 = vpack.c.bf16 %v2060, %v2058
        %v2105 = vpack.c.bf16 %v2061, %v2059
        %v2106 = vpack.c.bf16 %v2064, %v2062
        %v2107 = vpack.c.bf16 %v2065, %v2063
        %v2108 = vpack.c.bf16 %v2068, %v2066
        %v2109 = vpack.c.bf16 %v2069, %v2067
        %v2110 = vpack.c.bf16 %v2072, %v2070
        %v2111 = vpack.c.bf16 %v2073, %v2071
        %v2112 = vpack.c.bf16 %v2076, %v2074
        %v2113 = vpack.c.bf16 %v2077, %v2075
        %v2114 = vpack.c.bf16 %v2080, %v2078
        %v2115 = vpack.c.bf16 %v2081, %v2079
        %v2116 = vpack.c.bf16 %v2084, %v2082
        %v2117 = vpack.c.bf16 %v2085, %v2083
        %v2118 = vld [vmem:[#allocation3] sm:$0xff]
        %v2119 = vld [vmem:[#allocation3 + $0x8] sm:$0xff]
        %v2120 = vld [vmem:[#allocation3 + $0x10] sm:$0xff]
        %v2121 = vld [vmem:[#allocation3 + $0x18] sm:$0xff]
        %v2122 = vld [vmem:[#allocation3 + $0x20] sm:$0xff]
        %v2123 = vld [vmem:[#allocation3 + $0x28] sm:$0xff]
        %v2124 = vld [vmem:[#allocation3 + $0x30] sm:$0xff]
        %v2125 = vld [vmem:[#allocation3 + $0x38] sm:$0xff]
        %v2126 = vld [vmem:[#allocation3 + $0x40] sm:$0xff]
        %v2127 = vld [vmem:[#allocation3 + $0x48] sm:$0xff]
        %v2128 = vld [vmem:[#allocation3 + $0x50] sm:$0xff]
        %v2129 = vld [vmem:[#allocation3 + $0x58] sm:$0xff]
        %v2130 = vld [vmem:[#allocation3 + $0x60] sm:$0xff]
        %v2131 = vld [vmem:[#allocation3 + $0x68] sm:$0xff]
        %v2132 = vld [vmem:[#allocation3 + $0x70] sm:$0xff]
        %v2133 = vld [vmem:[#allocation3 + $0x78] sm:$0xff]
        %2134 = vmatprep.subr.bf16.mxu0 0
        %2135 = vmatpush1.bf16.msra.mxu0 %v2118
        %2136 = vmatprep.subr.bf16.mxu0 0
        %2137 = vmatpush1.bf16.msra.mxu0 %v2119
        %2138 = vmatprep.subr.bf16.mxu0 0
        %2139 = vmatpush1.bf16.msra.mxu0 %v2120
        %2140 = vmatprep.subr.bf16.mxu0 0
        %2141 = vmatpush1.bf16.msra.mxu0 %v2121
        %2142 = vmatprep.subr.bf16.mxu0 0
        %2143 = vmatpush1.bf16.msra.mxu0 %v2122
        %2144 = vmatprep.subr.bf16.mxu0 0
        %2145 = vmatpush1.bf16.msra.mxu0 %v2123
        %2146 = vmatprep.subr.bf16.mxu0 0
        %2147 = vmatpush1.bf16.msra.mxu0 %v2124
        %2148 = vmatprep.subr.bf16.mxu0 0
        %2149 = vmatpush1.bf16.msra.mxu0 %v2125
        %2150 = vmatprep.subr.bf16.mxu0 0
        %2151 = vmatpush1.bf16.msra.mxu0 %v2126
        %2152 = vmatprep.subr.bf16.mxu0 0
        %2153 = vmatpush1.bf16.msra.mxu0 %v2127
        %2154 = vmatprep.subr.bf16.mxu0 0
        %2155 = vmatpush1.bf16.msra.mxu0 %v2128
        %2156 = vmatprep.subr.bf16.mxu0 0
        %2157 = vmatpush1.bf16.msra.mxu0 %v2129
        %2158 = vmatprep.subr.bf16.mxu0 0
        %2159 = vmatpush1.bf16.msra.mxu0 %v2130
        %2160 = vmatprep.subr.bf16.mxu0 0
        %2161 = vmatpush1.bf16.msra.mxu0 %v2131
        %2162 = vmatprep.subr.bf16.mxu0 0
        %2163 = vmatpush1.bf16.msra.mxu0 %v2132
        %2164 = vmatprep.subr.bf16.mxu0 0
        %2165 = vmatpush1.bf16.msra.mxu0 %v2133
        %2166 = vmatprep.mubr.bf16.mxu0 %v2087
        %2167 = vmatmul.mubr.bf16.gmra.mrb[0].mxu0 %v2086
        %v2168 = vpop.f32.mrb[0].mxu0
        %v2169 = vadd.f32 0.0, %v2168
        %v2170 = vpop.f32.mrb[0].mxu0
        %v2171 = vpop.f32.mrb[0].mxu0
        %v2172 = vadd.f32 0.0, %v2171
        %v2173 = vpop.f32.mrb[0].mxu0
        %2174 = vmatprep.mubr.bf16.mxu0 %v2089
        %2175 = vmatmul.mubr.bf16.gmra.mrb[0].mxu0 %v2088
        %v2176 = vpop.f32.mrb[0].mxu0
        %v2177 = vadd.f32 0.0, %v2176
        %v2178 = vpop.f32.mrb[0].mxu0
        %v2179 = vpop.f32.mrb[0].mxu0
        %v2180 = vadd.f32 0.0, %v2179
        %v2181 = vpop.f32.mrb[0].mxu0
        %2182 = vmatprep.mubr.bf16.mxu0 %v2091
        %2183 = vmatmul.mubr.bf16.gmra.mrb[0].mxu0 %v2090
        %v2184 = vpop.f32.mrb[0].mxu0
        %v2185 = vadd.f32 0.0, %v2184
        %v2186 = vpop.f32.mrb[0].mxu0
        %v2187 = vpop.f32.mrb[0].mxu0
        %v2188 = vadd.f32 0.0, %v2187
        %v2189 = vpop.f32.mrb[0].mxu0
        %2190 = vmatprep.mubr.bf16.mxu0 %v2093
        %2191 = vmatmul.mubr.bf16.gmra.mrb[0].mxu0 %v2092
        %v2192 = vpop.f32.mrb[0].mxu0
        %v2193 = vadd.f32 0.0, %v2192
        %v2194 = vpop.f32.mrb[0].mxu0
        %v2195 = vpop.f32.mrb[0].mxu0
        %v2196 = vadd.f32 0.0, %v2195
        %v2197 = vpop.f32.mrb[0].mxu0
        %2198 = vmatprep.mubr.bf16.mxu0 %v2095
        %2199 = vmatmul.mubr.bf16.gmra.mrb[0].mxu0 %v2094
        %v2200 = vpop.f32.mrb[0].mxu0
        %v2201 = vadd.f32 0.0, %v2200
        %v2202 = vpop.f32.mrb[0].mxu0
        %v2203 = vpop.f32.mrb[0].mxu0
        %v2204 = vadd.f32 0.0, %v2203
        %v2205 = vpop.f32.mrb[0].mxu0
        %2206 = vmatprep.mubr.bf16.mxu0 %v2097
        %2207 = vmatmul.mubr.bf16.gmra.mrb[0].mxu0 %v2096
        %v2208 = vpop.f32.mrb[0].mxu0
        %v2209 = vadd.f32 0.0, %v2208
        %v2210 = vpop.f32.mrb[0].mxu0
        %v2211 = vpop.f32.mrb[0].mxu0
        %v2212 = vadd.f32 0.0, %v2211
        %v2213 = vpop.f32.mrb[0].mxu0
        %2214 = vmatprep.mubr.bf16.mxu0 %v2099
        %2215 = vmatmul.mubr.bf16.gmra.mrb[0].mxu0 %v2098
        %v2216 = vpop.f32.mrb[0].mxu0
        %v2217 = vadd.f32 0.0, %v2216
        %v2218 = vpop.f32.mrb[0].mxu0
        %v2219 = vpop.f32.mrb[0].mxu0
        %v2220 = vadd.f32 0.0, %v2219
        %v2221 = vpop.f32.mrb[0].mxu0
        %2222 = vmatprep.mubr.bf16.mxu0 %v2101
        %2223 = vmatmul.mubr.bf16.gmra.mrb[0].mxu0 %v2100
        %v2224 = vpop.f32.mrb[0].mxu0
        %v2225 = vadd.f32 0.0, %v2224
        %v2226 = vpop.f32.mrb[0].mxu0
        %v2227 = vpop.f32.mrb[0].mxu0
        %v2228 = vadd.f32 0.0, %v2227
        %v2229 = vpop.f32.mrb[0].mxu0
        %2230 = vmatprep.mubr.bf16.mxu0 %v2103
        %2231 = vmatmul.mubr.bf16.gmra.mrb[0].mxu0 %v2102
        %v2232 = vpop.f32.mrb[0].mxu0
        %v2233 = vadd.f32 0.0, %v2232
        %v2234 = vpop.f32.mrb[0].mxu0
        %v2235 = vpop.f32.mrb[0].mxu0
        %v2236 = vadd.f32 0.0, %v2235
        %v2237 = vpop.f32.mrb[0].mxu0
        %2238 = vmatprep.mubr.bf16.mxu0 %v2105
        %2239 = vmatmul.mubr.bf16.gmra.mrb[0].mxu0 %v2104
        %v2240 = vpop.f32.mrb[0].mxu0
        %v2241 = vadd.f32 0.0, %v2240
        %v2242 = vpop.f32.mrb[0].mxu0
        %v2243 = vpop.f32.mrb[0].mxu0
        %v2244 = vadd.f32 0.0, %v2243
        %v2245 = vpop.f32.mrb[0].mxu0
        %2246 = vmatprep.mubr.bf16.mxu0 %v2107
        %2247 = vmatmul.mubr.bf16.gmra.mrb[0].mxu0 %v2106
        %v2248 = vpop.f32.mrb[0].mxu0
        %v2249 = vadd.f32 0.0, %v2248
        %v2250 = vpop.f32.mrb[0].mxu0
        %v2251 = vpop.f32.mrb[0].mxu0
        %v2252 = vadd.f32 0.0, %v2251
        %v2253 = vpop.f32.mrb[0].mxu0
        %2254 = vmatprep.mubr.bf16.mxu0 %v2109
        %2255 = vmatmul.mubr.bf16.gmra.mrb[0].mxu0 %v2108
        %v2256 = vpop.f32.mrb[0].mxu0
        %v2257 = vadd.f32 0.0, %v2256
        %v2258 = vpop.f32.mrb[0].mxu0
        %v2259 = vpop.f32.mrb[0].mxu0
        %v2260 = vadd.f32 0.0, %v2259
        %v2261 = vpop.f32.mrb[0].mxu0
        %2262 = vmatprep.mubr.bf16.mxu0 %v2111
        %2263 = vmatmul.mubr.bf16.gmra.mrb[0].mxu0 %v2110
        %v2264 = vpop.f32.mrb[0].mxu0
        %v2265 = vadd.f32 0.0, %v2264
        %v2266 = vpop.f32.mrb[0].mxu0
        %v2267 = vpop.f32.mrb[0].mxu0
        %v2268 = vadd.f32 0.0, %v2267
        %v2269 = vpop.f32.mrb[0].mxu0
        %2270 = vmatprep.mubr.bf16.mxu0 %v2113
        %2271 = vmatmul.mubr.bf16.gmra.mrb[0].mxu0 %v2112
        %v2272 = vpop.f32.mrb[0].mxu0
        %v2273 = vadd.f32 0.0, %v2272
        %v2274 = vpop.f32.mrb[0].mxu0
        %v2275 = vpop.f32.mrb[0].mxu0
        %v2276 = vadd.f32 0.0, %v2275
        %v2277 = vpop.f32.mrb[0].mxu0
        %2278 = vmatprep.mubr.bf16.mxu0 %v2115
        %2279 = vmatmul.mubr.bf16.gmra.mrb[0].mxu0 %v2114
        %v2280 = vpop.f32.mrb[0].mxu0
        %v2281 = vadd.f32 0.0, %v2280
        %v2282 = vpop.f32.mrb[0].mxu0
        %v2283 = vpop.f32.mrb[0].mxu0
        %v2284 = vadd.f32 0.0, %v2283
        %v2285 = vpop.f32.mrb[0].mxu0
        %2286 = vmatprep.mubr.bf16.mxu0 %v2117
        %2287 = vmatmul.mubr.bf16.gmra.mrb[0].mxu0 %v2116
        %v2288 = vpop.f32.mrb[0].mxu0
        %v2289 = vadd.f32 0.0, %v2288
        %v2290 = vpop.f32.mrb[0].mxu0
        %v2291 = vpop.f32.mrb[0].mxu0
        %v2292 = vadd.f32 0.0, %v2291
        %v2293 = vpop.f32.mrb[0].mxu0
        %2294 = vdwg.mxu0
        %s2295 = sld [smem:[#allocation4]]
        %s2296 = sadd.f32 %s2295, 1.0
        %v2297 = vstv %s2296
        %v2298 = vmul.f32 %v2297, %v2169
        %v2299 = vmul.f32 %v2297, %v2172
        %v2300 = vmul.f32 %v2297, %v2177
        %v2301 = vmul.f32 %v2297, %v2180
        %v2302 = vmul.f32 %v2297, %v2185
        %v2303 = vmul.f32 %v2297, %v2188
        %v2304 = vmul.f32 %v2297, %v2193
        %v2305 = vmul.f32 %v2297, %v2196
        %v2306 = vmul.f32 %v2297, %v2201
        %v2307 = vmul.f32 %v2297, %v2204
        %v2308 = vmul.f32 %v2297, %v2209
        %v2309 = vmul.f32 %v2297, %v2212
        %v2310 = vmul.f32 %v2297, %v2217
        %v2311 = vmul.f32 %v2297, %v2220
        %v2312 = vmul.f32 %v2297, %v2225
        %v2313 = vmul.f32 %v2297, %v2228
        %v2314 = vmul.f32 %v2297, %v2233
        %v2315 = vmul.f32 %v2297, %v2236
        %v2316 = vmul.f32 %v2297, %v2241
        %v2317 = vmul.f32 %v2297, %v2244
        %v2318 = vmul.f32 %v2297, %v2249
        %v2319 = vmul.f32 %v2297, %v2252
        %v2320 = vmul.f32 %v2297, %v2257
        %v2321 = vmul.f32 %v2297, %v2260
        %v2322 = vmul.f32 %v2297, %v2265
        %v2323 = vmul.f32 %v2297, %v2268
        %v2324 = vmul.f32 %v2297, %v2273
        %v2325 = vmul.f32 %v2297, %v2276
        %v2326 = vmul.f32 %v2297, %v2281
        %v2327 = vmul.f32 %v2297, %v2284
        %v2328 = vmul.f32 %v2297, %v2289
        %v2329 = vmul.f32 %v2297, %v2292
        %2330 = vst [vmem:[%s367] sm:$0xff] %v2298
        %2331 = vst [vmem:[%s367 + $0x8] sm:$0xff] %v2299
        %2332 = vst [vmem:[%s367 + $0x10] sm:$0xff] %v2300
        %2333 = vst [vmem:[%s367 + $0x18] sm:$0xff] %v2301
        %2334 = vst [vmem:[%s367 + $0x20] sm:$0xff] %v2302
        %2335 = vst [vmem:[%s367 + $0x28] sm:$0xff] %v2303
        %2336 = vst [vmem:[%s367 + $0x30] sm:$0xff] %v2304
        %2337 = vst [vmem:[%s367 + $0x38] sm:$0xff] %v2305
        %2338 = vst [vmem:[%s367 + $0x40] sm:$0xff] %v2306
        %2339 = vst [vmem:[%s367 + $0x48] sm:$0xff] %v2307
        %2340 = vst [vmem:[%s367 + $0x50] sm:$0xff] %v2308
        %2341 = vst [vmem:[%s367 + $0x58] sm:$0xff] %v2309
        %2342 = vst [vmem:[%s367 + $0x60] sm:$0xff] %v2310
        %2343 = vst [vmem:[%s367 + $0x68] sm:$0xff] %v2311
        %2344 = vst [vmem:[%s367 + $0x70] sm:$0xff] %v2312
        %2345 = vst [vmem:[%s367 + $0x78] sm:$0xff] %v2313
        %2346 = vst [vmem:[%s367 + $0x80] sm:$0xff] %v2314
        %2347 = vst [vmem:[%s367 + $0x88] sm:$0xff] %v2315
        %2348 = vst [vmem:[%s367 + $0x90] sm:$0xff] %v2316
        %2349 = vst [vmem:[%s367 + $0x98] sm:$0xff] %v2317
        %2350 = vst [vmem:[%s367 + $0xa0] sm:$0xff] %v2318
        %2351 = vst [vmem:[%s367 + $0xa8] sm:$0xff] %v2319
        %2352 = vst [vmem:[%s367 + $0xb0] sm:$0xff] %v2320
        %2353 = vst [vmem:[%s367 + $0xb8] sm:$0xff] %v2321
        %2354 = vst [vmem:[%s367 + $0xc0] sm:$0xff] %v2322
        %2355 = vst [vmem:[%s367 + $0xc8] sm:$0xff] %v2323
        %2356 = vst [vmem:[%s367 + $0xd0] sm:$0xff] %v2324
        %2357 = vst [vmem:[%s367 + $0xd8] sm:$0xff] %v2325
        %2358 = vst [vmem:[%s367 + $0xe0] sm:$0xff] %v2326
        %2359 = vst [vmem:[%s367 + $0xe8] sm:$0xff] %v2327
        %2360 = vst [vmem:[%s367 + $0xf0] sm:$0xff] %v2328
        %2361 = vst [vmem:[%s367 + $0xf8] sm:$0xff] %v2329
        %s2362 = sand.u32 %s222, 1
        %s2363 = scalar_lea.sflag [#allocation7], %s2362
        %s2364 = sand.u32 %s222, 1
        %s2365 = smul.addr %s2364, 256
        %s2366 = scalar_lea.vmem [#allocation11], %s2365
        // Predicated region
        $region69: #{tpu_custom_call.1} parent=51 // pred_check
          %p2367 = pneg %p232
        $region70: #{tpu_custom_call.1} parent=51 // pred_check_branch
          %2369 = sbr.rel (%p2367) target = $region72
        $region71: #{tpu_custom_call.1} parent=51 // pred_region
          %s2370 = smul.u32 32, %s32
          %s2372 = ssub.s32 4096, 4096
          %2373 = vsyncadd %s2363, %s2372
          %s2374 = smul.addr %s31, 32
          %s2375 = sadd.s32 %s2370, %s2374
          %s2376 = smul.addr %s2375, 128
          %s2377 = scalar_lea.hbm %s8, %s2376
          %s2378 = sshll.u32 %s2366, 4
          %s2379 = int_to_ptr.vmem [resolvable:$true] %s2378
          %2384 = dma.vmem_to_hbm [thread:$0]  %s2379, 4096, %s2377, %s2363, 128, 128, 8
        $region72: #{tpu_custom_call.1} parent=51 // pred_fallthru
          _
      $region52: #{tpu_custom_call.1} parent=5 // pred_fallthru
        _
      %p2385 = scmp.le.s32.totalorder 2, %s22
      // Predicated region
      $region73: #{tpu_custom_call.1} parent=5 // pred_check
        %p2386 = pneg %p2385
      $region74: #{tpu_custom_call.1} parent=5 // pred_check_branch
        %2388 = sbr.rel (%p2386) target = $region76
      $region75: #{tpu_custom_call.1} parent=5 // pred_region
        %s2389 = ssub.s32 %s22, 2
        // Predicated region
        $region77: #{tpu_custom_call.1} parent=75 // pred_check
          %p2390 = pneg %p238
        $region78: #{tpu_custom_call.1} parent=75 // pred_check_branch
          %2392 = sbr.rel (%p2390) target = $region80
        $region79: #{tpu_custom_call.1} parent=75 // pred_region
          %s2393 = sand.u32 %s223, 1
          %s2394 = scalar_lea.sflag [#allocation7], %s2393
          %s2395 = sand.u32 %s223, 1
          %s2396 = smul.addr %s2395, 256
          %s2397 = scalar_lea.vmem [#allocation11], %s2396
          %2398 = dma.done %s2394, 4096
        $region80: #{tpu_custom_call.1} parent=75 // pred_fallthru
          _
      $region76: #{tpu_custom_call.1} parent=5 // pred_fallthru
        _
    $region6: #{tpu_custom_call.1} parent=1 // loop_footer
      %s26 = sadd.s32 1, %s22
    $region7: #{tpu_custom_call.1} parent=1 // loop_footer_branch
      %21 = sbr.rel target = $region3
    $region8: #{tpu_custom_call.1} parent=1 // loop_exit
      _
    %2399 = vsyncpa [#allocation6], 1
    %s2400 = scalar_lea.sflag [#allocation6], 1
    %2401 = vsyncpa %s2400, 1
    %2402 = vsyncpa [#allocation9], 1
    %2403 = vsyncpa [#allocation7], 1
    %s2404 = scalar_lea.sflag [#allocation7], 1
    %2405 = vsyncpa %s2404, 1

</llo_original>
